<compile_context>
chip_gen: v6e
topology: v6e:2x2x1
jax: 0.10.0
libtpu: 0.0.40
codegen_flags: <defaults>
</compile_context>

<pallas_src>
import numpy as np
import jax
import jax.numpy as jnp
from jax.experimental import pallas as pl
from jax.experimental.pallas import tpu as pltpu

_BN_EPS = 1e-5
_PACK_WIDTH = 128   # lane width of the packed parameter array
_OUT_WIDTH = 128    # lane-dense (padded) output slab width


# ------------------------- packed-parameter layout -------------------------

def _make_layout(D_in, H, H2, L):
    """Row layout of the single packed parameter array.

    Multi-row weight blocks start at 8-aligned rows (sublane-tile aligned) and are
    rounded up to 8 rows. The 19 per-feature 1-row vectors (BN gamma/beta and the
    fused head bias) are packed densely — consecutive rows, no per-row padding —
    with only the start of the group 8-aligned. Static 1-row slices inside a
    shared (8,128) tile are free. Weights are stored pre-transposed [in, out].
    """
    weight_blocks = [
        ("w1", D_in, H), ("w2", H, H2), ("w3", H2, H2), ("wf1", H2, L),
        ("whead", L, 2 * L),                     # fc21 | fc22 fused
        ("wf3", L, L), ("wf4", L, H2),
        ("w4", H2, H2), ("w5", H2, H), ("w6", H, D_in),
    ]
    vec_blocks = [
        ("g1", H), ("c1", H),
        ("g2", H2), ("c2", H2),
        ("g3", H2), ("c3", H2),
        ("gf1", L), ("cf1", L),
        ("bhead", 2 * L),
        ("gf3", L), ("cf3", L),
        ("gf4", H2), ("cf4", H2),
        ("g4", H2), ("c4", H2),
        ("g5", H), ("c5", H),
        ("g6", D_in), ("c6", D_in),
    ]
    layout = {}
    r = 0
    for name, k, n in weight_blocks:
        layout[name] = (r, k, n)
        r += ((k + 7) // 8) * 8          # weight blocks stay 8-row aligned
    for name, n in vec_blocks:           # dense 1-row packing (group start is aligned)
        layout[name] = (r, 1, n)
        r += 1
    rows = ((r + 7) // 8) * 8
    return layout, rows


# ------------------------------- kernel -------------------------------

def _build_kernel(B, D_in, L, layout):
    inv_b = 1.0 / float(B)
    n_payload = D_in + 2 * L
    n_pad = _OUT_WIDTH - n_payload

    def kernel(x_ref, eps_ref, p_ref, out_ref):
        def w(name):
            r, k, n = layout[name]
            return p_ref[r:r + k, :n]

        def vec(name):
            r, _, n = layout[name]
            return p_ref[r:r + 1, :n]

        def bn(y, g, c):
            # Training-mode BatchNorm1d, one-pass stats (biased variance, eps=1e-5),
            # folded into per-feature scale/shift so the per-element work is one FMA.
            s1 = jnp.sum(y, axis=0, keepdims=True)
            s2 = jnp.sum(y * y, axis=0, keepdims=True)
            m = s1 * inv_b
            var = s2 * inv_b - m * m
            scale = vec(g) * jax.lax.rsqrt(var + _BN_EPS)
            shift = vec(c) - m * scale
            return y * scale + shift

        def relu(t):
            return jnp.maximum(t, 0.0)

        def mm(xv, name):
            # MXU path. The Linear bias is dropped: the following training-mode BN
            # subtracts the batch mean, which cancels any per-feature constant.
            return jnp.dot(xv, w(name), preferred_element_type=jnp.float32)

        def mm_vpu(xv, name):
            # Degenerate contraction (K == latent_dim == 2): keep it off the MXU and
            # do K broadcast multiply-adds on the VPU instead.
            r, k, n = layout[name]
            acc = xv[:, 0:1] * p_ref[r:r + 1, :n]
            for i in range(1, k):
                acc = acc + xv[:, i:i + 1] * p_ref[r + i:r + i + 1, :n]
            return acc

        x = x_ref[...]
        eps = eps_ref[...]

        # ----- encode -----
        h = relu(bn(mm(x, "w1"), "g1", "c1"))
        h = relu(bn(mm(h, "w2"), "g2", "c2"))
        h = relu(bn(mm(h, "w3"), "g3", "c3"))
        h = relu(bn(mm(h, "wf1"), "gf1", "cf1"))

        # fused mu / logvar heads (fc21 | fc22); bias kept — no BN follows.
        heads = mm_vpu(h, "whead") + vec("bhead")
        mu = heads[:, :L]
        logvar = heads[:, L:2 * L]

        # ----- reparameterize (training mode; N(0,1) noise supplied externally) -----
        z = eps * jnp.exp(0.5 * logvar) + mu

        # ----- decode -----
        d = relu(bn(mm_vpu(z, "wf3"), "gf3", "cf3"))
        d = relu(bn(mm_vpu(d, "wf4"), "gf4", "cf4"))
        d = relu(bn(mm(d, "w4"), "g4", "c4"))
        d = relu(bn(mm(d, "w5"), "g5", "c5"))
        recon = bn(mm(d, "w6"), "g6", "c6")     # final layer: BN, no ReLU

        # single lane-dense (B,128) store: [ recon | mu | logvar | zero-pad ]
        pad = jnp.zeros((B, n_pad), jnp.float32)
        out_ref[...] = jnp.concatenate([recon, mu, logvar, pad], axis=1)

    return kernel


# ------------------------------- wrapper -------------------------------

def autoencoder_forward(x, eps_noise, ppack, *, D_in, H, H2, L, layout):
    """x: [B, D_in] f32, eps_noise: [B, L] f32, ppack: packed params [R, 128] f32."""
    B = x.shape[0]
    assert x.shape == (B, D_in) and eps_noise.shape == (B, L), \
        "shape mismatch (kernel is traced per (B, D_in, L))"
    assert D_in + 2 * L <= _OUT_WIDTH

    matmul_flops = 2 * B * (D_in * H + H * H2 + H2 * H2 + H2 * L + L * (2 * L)
                            + L * L + L * H2 + H2 * H2 + H2 * H + H * D_in)
    transc = (H + H2 + H2 + L + L + H2 + H2 + H + D_in) + B * L   # 9x rsqrt + exp
    bytes_accessed = 4 * (x.size + eps_noise.size + ppack.size + B * _OUT_WIDTH)

    vmem = pl.BlockSpec(memory_space=pltpu.MemorySpace.VMEM)
    out = pl.pallas_call(
        _build_kernel(B, D_in, L, layout),
        out_shape=jax.ShapeDtypeStruct((B, _OUT_WIDTH), jnp.float32),
        in_specs=[vmem, vmem, vmem],
        out_specs=vmem,
        cost_estimate=pl.CostEstimate(
            flops=int(matmul_flops),
            transcendentals=int(transc),
            bytes_accessed=int(bytes_accessed),
        ),
    )(x, eps_noise, ppack)
    return out[:, :D_in], out[:, D_in:D_in + L], out[:, D_in + L:D_in + 2 * L]


# ------------------------- parameter construction -------------------------

def make_module_params(key, D_in, H=50, H2=12, L=2):
    """PyTorch-equivalent parameters. Linear weights stored pre-transposed [in, out]."""
    lin_specs = [("linear1", D_in, H), ("linear2", H, H2), ("linear3", H2, H2),
                 ("fc1", H2, L), ("fc21", L, L), ("fc22", L, L),
                 ("fc3", L, L), ("fc4", L, H2), ("linear4", H2, H2),
                 ("linear5", H2, H), ("linear6", H, D_in)]
    bn_specs = [("lin_bn1", H), ("lin_bn2", H2), ("lin_bn3", H2), ("bn1", L),
                ("fc_bn3", L), ("fc_bn4", H2), ("lin_bn4", H2), ("lin_bn5", H),
                ("lin_bn6", D_in)]
    P = {}
    keys = jax.random.split(key, len(lin_specs) + len(bn_specs))
    for k, (name, fi, fo) in zip(keys[:len(lin_specs)], lin_specs):
        kw, kb = jax.random.split(k)
        bound = 1.0 / np.sqrt(fi)
        P[name] = {
            "W": jax.random.uniform(kw, (fi, fo), jnp.float32, -bound, bound),
            "b": jax.random.uniform(kb, (fo,), jnp.float32, -bound, bound),
        }
    for k, (name, f) in zip(keys[len(lin_specs):], bn_specs):
        kg, kb = jax.random.split(k)
        P[name] = {
            "gamma": jax.random.uniform(kg, (f,), jnp.float32, 0.8, 1.2),
            "beta": jax.random.uniform(kb, (f,), jnp.float32, -0.1, 0.1),
        }
    return P


def pack_params(P, layout, rows, L, width=_PACK_WIDTH):
    """Pack all parameters into one f32 [rows, 128] array.

    NOTE: biases of Linear layers that are immediately followed by BatchNorm are
    intentionally NOT packed — training-mode BN subtracts the batch mean, which
    cancels any per-feature constant. This is only valid for training-mode BN;
    eval-mode (running stats) would require the biases back.
    """
    buf = np.zeros((rows, width), np.float32)

    def put(name, arr):
        r, k, n = layout[name]
        buf[r:r + k, :n] = np.asarray(arr, np.float32).reshape(k, n)

    put("w1", P["linear1"]["W"]); put("w2", P["linear2"]["W"])
    put("w3", P["linear3"]["W"]); put("wf1", P["fc1"]["W"])
    put("whead", np.concatenate([np.asarray(P["fc21"]["W"]),
                                 np.asarray(P["fc22"]["W"])], axis=1))
    put("wf3", P["fc3"]["W"]); put("wf4", P["fc4"]["W"])
    put("w4", P["linear4"]["W"]); put("w5", P["linear5"]["W"])
    put("w6", P["linear6"]["W"])
    put("bhead", np.concatenate([np.asarray(P["fc21"]["b"]),
                                 np.asarray(P["fc22"]["b"])], axis=0))
    for src, g, c in [("lin_bn1", "g1", "c1"), ("lin_bn2", "g2", "c2"),
                      ("lin_bn3", "g3", "c3"), ("bn1", "gf1", "cf1"),
                      ("fc_bn3", "gf3", "cf3"), ("fc_bn4", "gf4", "cf4"),
                      ("lin_bn4", "g4", "c4"), ("lin_bn5", "g5", "c5"),
                      ("lin_bn6", "g6", "c6")]:
        put(g, P[src]["gamma"]); put(c, P[src]["beta"])
    return jnp.asarray(buf)


# ------------------------- pure-JAX reference (for checking) -------------------------

def reference_forward(x, eps_noise, P):
    lin = lambda xv, n: xv @ P[n]["W"] + P[n]["b"]

    def bn(xv, n):
        m = jnp.mean(xv, axis=0, keepdims=True)
        v = jnp.mean((xv - m) ** 2, axis=0, keepdims=True)
        return (xv - m) / jnp.sqrt(v + _BN_EPS) * P[n]["gamma"] + P[n]["beta"]

    relu = lambda t: jnp.maximum(t, 0.0)

    h = relu(bn(lin(x, "linear1"), "lin_bn1"))
    h = relu(bn(lin(h, "linear2"), "lin_bn2"))
    h = relu(bn(lin(h, "linear3"), "lin_bn3"))
    h = relu(bn(lin(h, "fc1"), "bn1"))
    mu = lin(h, "fc21")
    logvar = lin(h, "fc22")
    z = eps_noise * jnp.exp(0.5 * logvar) + mu
    d = relu(bn(lin(z, "fc3"), "fc_bn3"))
    d = relu(bn(lin(d, "fc4"), "fc_bn4"))
    d = relu(bn(lin(d, "linear4"), "lin_bn4"))
    d = relu(bn(lin(d, "linear5"), "lin_bn5"))
    recon = bn(lin(d, "linear6"), "lin_bn6")
    return recon, mu, logvar


if __name__ == "__main__":
    B, D_in, H, H2, L = 8, 16, 50, 12, 2

    root = jax.random.PRNGKey(0)
    k_x, k_eps, k_p = jax.random.split(root, 3)

    x = jax.random.normal(k_x, (B, D_in), jnp.float32)
    # TODO(synk): PyTorch's reparameterize draws eps from torch's RNG inside the op;
    # here the N(0,1) noise is supplied externally (deterministic) as a third input.
    eps_noise = jax.random.normal(k_eps, (B, L), jnp.float32)

    P = make_module_params(k_p, D_in, H, H2, L)
    layout, rows = _make_layout(D_in, H, H2, L)
    ppack = pack_params(P, layout, rows, L)

    recon, mu, logvar = autoencoder_forward(
        x, eps_noise, ppack, D_in=D_in, H=H, H2=H2, L=L, layout=layout)
    jax.block_until_ready((recon, mu, logvar))

    r_recon, r_mu, r_logvar = reference_forward(x, eps_noise, P)
    assert recon.shape == (B, D_in) and mu.shape == (B, L) and logvar.shape == (B, L)
    np.testing.assert_allclose(np.asarray(mu), np.asarray(r_mu), rtol=5e-5, atol=5e-5)
    np.testing.assert_allclose(np.asarray(logvar), np.asarray(r_logvar), rtol=5e-5, atol=5e-5)
    np.testing.assert_allclose(np.asarray(recon), np.asarray(r_recon), rtol=5e-5, atol=5e-5)

    print("KERNEL_OK")
</pallas_src>

<mosaic_0001>
module attributes {stable_mosaic.version = 11 : i64} {
  func.func @kernel(%arg0: memref<8x16xf32, #tpu.memory_space<vmem>>, %arg1: memref<8x2xf32, #tpu.memory_space<vmem>>, %arg2: memref<240x128xf32, #tpu.memory_space<vmem>>, %arg3: memref<8x128xf32, #tpu.memory_space<vmem>>) attributes {dimension_semantics = [], scalar_prefetch = 0 : i64, scratch_operands = 0 : i64, tpu.core_type = #tpu.core_type<tc>} {
    %c0 = arith.constant 0 : index
    %c0_0 = arith.constant 0 : index
    %0 = vector.load %arg0[%c0, %c0_0] : memref<8x16xf32, #tpu.memory_space<vmem>>, vector<8x16xf32>
    %c0_1 = arith.constant 0 : index
    %c0_2 = arith.constant 0 : index
    %1 = vector.load %arg1[%c0_1, %c0_2] : memref<8x2xf32, #tpu.memory_space<vmem>>, vector<8x2xf32>
    %c0_3 = arith.constant 0 : index
    %c0_4 = arith.constant 0 : index
    %2 = vector.load %arg2[%c0_3, %c0_4] : memref<240x128xf32, #tpu.memory_space<vmem>>, vector<16x50xf32>
    %cst = arith.constant dense<0.000000e+00> : vector<8x50xf32>
    %3 = tpu.matmul %0, %2, %cst {dimension_numbers = #tpu.dot_dimension_numbers<[1], [0], [0], [1], [0, 0, 1, 1], [], []>} : vector<8x16xf32>, vector<16x50xf32>, vector<8x50xf32> -> vector<8x50xf32>
    %cst_5 = arith.constant dense<0.000000e+00> : vector<50xf32>
    %4 = vector.multi_reduction <add>, %3, %cst_5 [0] : vector<8x50xf32> to vector<50xf32>
    %5 = vector.shape_cast %4 : vector<50xf32> to vector<1x50xf32>
    %6 = arith.mulf %3, %3 : vector<8x50xf32>
    %cst_6 = arith.constant dense<0.000000e+00> : vector<50xf32>
    %7 = vector.multi_reduction <add>, %6, %cst_6 [0] : vector<8x50xf32> to vector<50xf32>
    %8 = vector.shape_cast %7 : vector<50xf32> to vector<1x50xf32>
    %cst_7 = arith.constant 1.250000e-01 : f32
    %9 = vector.broadcast %cst_7 : f32 to vector<1x50xf32>
    %10 = arith.mulf %5, %9 : vector<1x50xf32>
    %cst_8 = arith.constant 1.250000e-01 : f32
    %11 = vector.broadcast %cst_8 : f32 to vector<1x50xf32>
    %12 = arith.mulf %8, %11 : vector<1x50xf32>
    %13 = arith.mulf %10, %10 : vector<1x50xf32>
    %14 = arith.subf %12, %13 : vector<1x50xf32>
    %c216 = arith.constant 216 : index
    %c0_9 = arith.constant 0 : index
    %15 = vector.load %arg2[%c216, %c0_9] : memref<240x128xf32, #tpu.memory_space<vmem>>, vector<1x50xf32>
    %cst_10 = arith.constant 9.99999974E-6 : f32
    %16 = vector.broadcast %cst_10 : f32 to vector<1x50xf32>
    %17 = arith.addf %14, %16 : vector<1x50xf32>
    %18 = math.rsqrt %17 : vector<1x50xf32>
    %19 = arith.mulf %15, %18 : vector<1x50xf32>
    %c217 = arith.constant 217 : index
    %c0_11 = arith.constant 0 : index
    %20 = vector.load %arg2[%c217, %c0_11] : memref<240x128xf32, #tpu.memory_space<vmem>>, vector<1x50xf32>
    %21 = arith.mulf %10, %19 : vector<1x50xf32>
    %22 = arith.subf %20, %21 : vector<1x50xf32>
    %23 = vector.broadcast %19 : vector<1x50xf32> to vector<8x50xf32>
    %24 = arith.mulf %3, %23 : vector<8x50xf32>
    %25 = vector.broadcast %22 : vector<1x50xf32> to vector<8x50xf32>
    %26 = arith.addf %24, %25 : vector<8x50xf32>
    %cst_12 = arith.constant 0.000000e+00 : f32
    %27 = vector.broadcast %cst_12 : f32 to vector<8x50xf32>
    %28 = arith.maximumf %26, %27 : vector<8x50xf32>
    %c16 = arith.constant 16 : index
    %c0_13 = arith.constant 0 : index
    %29 = vector.load %arg2[%c16, %c0_13] : memref<240x128xf32, #tpu.memory_space<vmem>>, vector<50x12xf32>
    %cst_14 = arith.constant dense<0.000000e+00> : vector<8x12xf32>
    %30 = tpu.matmul %28, %29, %cst_14 {dimension_numbers = #tpu.dot_dimension_numbers<[1], [0], [0], [1], [0, 0, 1, 1], [], []>} : vector<8x50xf32>, vector<50x12xf32>, vector<8x12xf32> -> vector<8x12xf32>
    %cst_15 = arith.constant dense<0.000000e+00> : vector<12xf32>
    %31 = vector.multi_reduction <add>, %30, %cst_15 [0] : vector<8x12xf32> to vector<12xf32>
    %32 = vector.shape_cast %31 : vector<12xf32> to vector<1x12xf32>
    %33 = arith.mulf %30, %30 : vector<8x12xf32>
    %cst_16 = arith.constant dense<0.000000e+00> : vector<12xf32>
    %34 = vector.multi_reduction <add>, %33, %cst_16 [0] : vector<8x12xf32> to vector<12xf32>
    %35 = vector.shape_cast %34 : vector<12xf32> to vector<1x12xf32>
    %cst_17 = arith.constant 1.250000e-01 : f32
    %36 = vector.broadcast %cst_17 : f32 to vector<1x12xf32>
    %37 = arith.mulf %32, %36 : vector<1x12xf32>
    %cst_18 = arith.constant 1.250000e-01 : f32
    %38 = vector.broadcast %cst_18 : f32 to vector<1x12xf32>
    %39 = arith.mulf %35, %38 : vector<1x12xf32>
    %40 = arith.mulf %37, %37 : vector<1x12xf32>
    %41 = arith.subf %39, %40 : vector<1x12xf32>
    %c218 = arith.constant 218 : index
    %c0_19 = arith.constant 0 : index
    %42 = vector.load %arg2[%c218, %c0_19] : memref<240x128xf32, #tpu.memory_space<vmem>>, vector<1x12xf32>
    %cst_20 = arith.constant 9.99999974E-6 : f32
    %43 = vector.broadcast %cst_20 : f32 to vector<1x12xf32>
    %44 = arith.addf %41, %43 : vector<1x12xf32>
    %45 = math.rsqrt %44 : vector<1x12xf32>
    %46 = arith.mulf %42, %45 : vector<1x12xf32>
    %c219 = arith.constant 219 : index
    %c0_21 = arith.constant 0 : index
    %47 = vector.load %arg2[%c219, %c0_21] : memref<240x128xf32, #tpu.memory_space<vmem>>, vector<1x12xf32>
    %48 = arith.mulf %37, %46 : vector<1x12xf32>
    %49 = arith.subf %47, %48 : vector<1x12xf32>
    %50 = vector.broadcast %46 : vector<1x12xf32> to vector<8x12xf32>
    %51 = arith.mulf %30, %50 : vector<8x12xf32>
    %52 = vector.broadcast %49 : vector<1x12xf32> to vector<8x12xf32>
    %53 = arith.addf %51, %52 : vector<8x12xf32>
    %cst_22 = arith.constant 0.000000e+00 : f32
    %54 = vector.broadcast %cst_22 : f32 to vector<8x12xf32>
    %55 = arith.maximumf %53, %54 : vector<8x12xf32>
    %c72 = arith.constant 72 : index
    %c0_23 = arith.constant 0 : index
    %56 = vector.load %arg2[%c72, %c0_23] : memref<240x128xf32, #tpu.memory_space<vmem>>, vector<12x12xf32>
    %cst_24 = arith.constant dense<0.000000e+00> : vector<8x12xf32>
    %57 = tpu.matmul %55, %56, %cst_24 {dimension_numbers = #tpu.dot_dimension_numbers<[1], [0], [0], [1], [0, 0, 1, 1], [], []>} : vector<8x12xf32>, vector<12x12xf32>, vector<8x12xf32> -> vector<8x12xf32>
    %cst_25 = arith.constant dense<0.000000e+00> : vector<12xf32>
    %58 = vector.multi_reduction <add>, %57, %cst_25 [0] : vector<8x12xf32> to vector<12xf32>
    %59 = vector.shape_cast %58 : vector<12xf32> to vector<1x12xf32>
    %60 = arith.mulf %57, %57 : vector<8x12xf32>
    %cst_26 = arith.constant dense<0.000000e+00> : vector<12xf32>
    %61 = vector.multi_reduction <add>, %60, %cst_26 [0] : vector<8x12xf32> to vector<12xf32>
    %62 = vector.shape_cast %61 : vector<12xf32> to vector<1x12xf32>
    %cst_27 = arith.constant 1.250000e-01 : f32
    %63 = vector.broadcast %cst_27 : f32 to vector<1x12xf32>
    %64 = arith.mulf %59, %63 : vector<1x12xf32>
    %cst_28 = arith.constant 1.250000e-01 : f32
    %65 = vector.broadcast %cst_28 : f32 to vector<1x12xf32>
    %66 = arith.mulf %62, %65 : vector<1x12xf32>
    %67 = arith.mulf %64, %64 : vector<1x12xf32>
    %68 = arith.subf %66, %67 : vector<1x12xf32>
    %c220 = arith.constant 220 : index
    %c0_29 = arith.constant 0 : index
    %69 = vector.load %arg2[%c220, %c0_29] : memref<240x128xf32, #tpu.memory_space<vmem>>, vector<1x12xf32>
    %cst_30 = arith.constant 9.99999974E-6 : f32
    %70 = vector.broadcast %cst_30 : f32 to vector<1x12xf32>
    %71 = arith.addf %68, %70 : vector<1x12xf32>
    %72 = math.rsqrt %71 : vector<1x12xf32>
    %73 = arith.mulf %69, %72 : vector<1x12xf32>
    %c221 = arith.constant 221 : index
    %c0_31 = arith.constant 0 : index
    %74 = vector.load %arg2[%c221, %c0_31] : memref<240x128xf32, #tpu.memory_space<vmem>>, vector<1x12xf32>
    %75 = arith.mulf %64, %73 : vector<1x12xf32>
    %76 = arith.subf %74, %75 : vector<1x12xf32>
    %77 = vector.broadcast %73 : vector<1x12xf32> to vector<8x12xf32>
    %78 = arith.mulf %57, %77 : vector<8x12xf32>
    %79 = vector.broadcast %76 : vector<1x12xf32> to vector<8x12xf32>
    %80 = arith.addf %78, %79 : vector<8x12xf32>
    %cst_32 = arith.constant 0.000000e+00 : f32
    %81 = vector.broadcast %cst_32 : f32 to vector<8x12xf32>
    %82 = arith.maximumf %80, %81 : vector<8x12xf32>
    %c88 = arith.constant 88 : index
    %c0_33 = arith.constant 0 : index
    %83 = vector.load %arg2[%c88, %c0_33] : memref<240x128xf32, #tpu.memory_space<vmem>>, vector<12x2xf32>
    %cst_34 = arith.constant dense<0.000000e+00> : vector<8x2xf32>
    %84 = tpu.matmul %82, %83, %cst_34 {dimension_numbers = #tpu.dot_dimension_numbers<[1], [0], [0], [1], [0, 0, 1, 1], [], []>} : vector<8x12xf32>, vector<12x2xf32>, vector<8x2xf32> -> vector<8x2xf32>
    %cst_35 = arith.constant dense<0.000000e+00> : vector<2xf32>
    %85 = vector.multi_reduction <add>, %84, %cst_35 [0] : vector<8x2xf32> to vector<2xf32>
    %86 = vector.shape_cast %85 : vector<2xf32> to vector<1x2xf32>
    %87 = arith.mulf %84, %84 : vector<8x2xf32>
    %cst_36 = arith.constant dense<0.000000e+00> : vector<2xf32>
    %88 = vector.multi_reduction <add>, %87, %cst_36 [0] : vector<8x2xf32> to vector<2xf32>
    %89 = vector.shape_cast %88 : vector<2xf32> to vector<1x2xf32>
    %cst_37 = arith.constant 1.250000e-01 : f32
    %90 = vector.broadcast %cst_37 : f32 to vector<1x2xf32>
    %91 = arith.mulf %86, %90 : vector<1x2xf32>
    %cst_38 = arith.constant 1.250000e-01 : f32
    %92 = vector.broadcast %cst_38 : f32 to vector<1x2xf32>
    %93 = arith.mulf %89, %92 : vector<1x2xf32>
    %94 = arith.mulf %91, %91 : vector<1x2xf32>
    %95 = arith.subf %93, %94 : vector<1x2xf32>
    %c222 = arith.constant 222 : index
    %c0_39 = arith.constant 0 : index
    %96 = vector.load %arg2[%c222, %c0_39] : memref<240x128xf32, #tpu.memory_space<vmem>>, vector<1x2xf32>
    %cst_40 = arith.constant 9.99999974E-6 : f32
    %97 = vector.broadcast %cst_40 : f32 to vector<1x2xf32>
    %98 = arith.addf %95, %97 : vector<1x2xf32>
    %99 = math.rsqrt %98 : vector<1x2xf32>
    %100 = arith.mulf %96, %99 : vector<1x2xf32>
    %c223 = arith.constant 223 : index
    %c0_41 = arith.constant 0 : index
    %101 = vector.load %arg2[%c223, %c0_41] : memref<240x128xf32, #tpu.memory_space<vmem>>, vector<1x2xf32>
    %102 = arith.mulf %91, %100 : vector<1x2xf32>
    %103 = arith.subf %101, %102 : vector<1x2xf32>
    %104 = vector.broadcast %100 : vector<1x2xf32> to vector<8x2xf32>
    %105 = arith.mulf %84, %104 : vector<8x2xf32>
    %106 = vector.broadcast %103 : vector<1x2xf32> to vector<8x2xf32>
    %107 = arith.addf %105, %106 : vector<8x2xf32>
    %cst_42 = arith.constant 0.000000e+00 : f32
    %108 = vector.broadcast %cst_42 : f32 to vector<8x2xf32>
    %109 = arith.maximumf %107, %108 : vector<8x2xf32>
    %110 = vector.extract_strided_slice %109 {offsets = [0, 0], sizes = [8, 1], strides = [1, 1]} : vector<8x2xf32> to vector<8x1xf32>
    %c104 = arith.constant 104 : index
    %c0_43 = arith.constant 0 : index
    %111 = vector.load %arg2[%c104, %c0_43] : memref<240x128xf32, #tpu.memory_space<vmem>>, vector<1x4xf32>
    %112 = vector.broadcast %110 : vector<8x1xf32> to vector<8x4xf32>
    %113 = vector.broadcast %111 : vector<1x4xf32> to vector<8x4xf32>
    %114 = arith.mulf %112, %113 : vector<8x4xf32>
    %115 = vector.extract_strided_slice %109 {offsets = [0, 1], sizes = [8, 1], strides = [1, 1]} : vector<8x2xf32> to vector<8x1xf32>
    %c105 = arith.constant 105 : index
    %c0_44 = arith.constant 0 : index
    %116 = vector.load %arg2[%c105, %c0_44] : memref<240x128xf32, #tpu.memory_space<vmem>>, vector<1x4xf32>
    %117 = vector.broadcast %115 : vector<8x1xf32> to vector<8x4xf32>
    %118 = vector.broadcast %116 : vector<1x4xf32> to vector<8x4xf32>
    %119 = arith.mulf %117, %118 : vector<8x4xf32>
    %120 = arith.addf %114, %119 : vector<8x4xf32>
    %c224 = arith.constant 224 : index
    %c0_45 = arith.constant 0 : index
    %121 = vector.load %arg2[%c224, %c0_45] : memref<240x128xf32, #tpu.memory_space<vmem>>, vector<1x4xf32>
    %122 = vector.broadcast %121 : vector<1x4xf32> to vector<8x4xf32>
    %123 = arith.addf %120, %122 : vector<8x4xf32>
    %124 = vector.extract_strided_slice %123 {offsets = [0, 0], sizes = [8, 2], strides = [1, 1]} : vector<8x4xf32> to vector<8x2xf32>
    %125 = vector.extract_strided_slice %123 {offsets = [0, 2], sizes = [8, 2], strides = [1, 1]} : vector<8x4xf32> to vector<8x2xf32>
    %cst_46 = arith.constant 5.000000e-01 : f32
    %126 = vector.broadcast %cst_46 : f32 to vector<8x2xf32>
    %127 = arith.mulf %126, %125 : vector<8x2xf32>
    %128 = math.exp %127 : vector<8x2xf32>
    %129 = arith.mulf %1, %128 : vector<8x2xf32>
    %130 = arith.addf %129, %124 : vector<8x2xf32>
    %131 = vector.extract_strided_slice %130 {offsets = [0, 0], sizes = [8, 1], strides = [1, 1]} : vector<8x2xf32> to vector<8x1xf32>
    %c112 = arith.constant 112 : index
    %c0_47 = arith.constant 0 : index
    %132 = vector.load %arg2[%c112, %c0_47] : memref<240x128xf32, #tpu.memory_space<vmem>>, vector<1x2xf32>
    %133 = vector.broadcast %131 : vector<8x1xf32> to vector<8x2xf32>
    %134 = vector.broadcast %132 : vector<1x2xf32> to vector<8x2xf32>
    %135 = arith.mulf %133, %134 : vector<8x2xf32>
    %136 = vector.extract_strided_slice %130 {offsets = [0, 1], sizes = [8, 1], strides = [1, 1]} : vector<8x2xf32> to vector<8x1xf32>
    %c113 = arith.constant 113 : index
    %c0_48 = arith.constant 0 : index
    %137 = vector.load %arg2[%c113, %c0_48] : memref<240x128xf32, #tpu.memory_space<vmem>>, vector<1x2xf32>
    %138 = vector.broadcast %136 : vector<8x1xf32> to vector<8x2xf32>
    %139 = vector.broadcast %137 : vector<1x2xf32> to vector<8x2xf32>
    %140 = arith.mulf %138, %139 : vector<8x2xf32>
    %141 = arith.addf %135, %140 : vector<8x2xf32>
    %cst_49 = arith.constant dense<0.000000e+00> : vector<2xf32>
    %142 = vector.multi_reduction <add>, %141, %cst_49 [0] : vector<8x2xf32> to vector<2xf32>
    %143 = vector.shape_cast %142 : vector<2xf32> to vector<1x2xf32>
    %144 = arith.mulf %141, %141 : vector<8x2xf32>
    %cst_50 = arith.constant dense<0.000000e+00> : vector<2xf32>
    %145 = vector.multi_reduction <add>, %144, %cst_50 [0] : vector<8x2xf32> to vector<2xf32>
    %146 = vector.shape_cast %145 : vector<2xf32> to vector<1x2xf32>
    %cst_51 = arith.constant 1.250000e-01 : f32
    %147 = vector.broadcast %cst_51 : f32 to vector<1x2xf32>
    %148 = arith.mulf %143, %147 : vector<1x2xf32>
    %cst_52 = arith.constant 1.250000e-01 : f32
    %149 = vector.broadcast %cst_52 : f32 to vector<1x2xf32>
    %150 = arith.mulf %146, %149 : vector<1x2xf32>
    %151 = arith.mulf %148, %148 : vector<1x2xf32>
    %152 = arith.subf %150, %151 : vector<1x2xf32>
    %c225 = arith.constant 225 : index
    %c0_53 = arith.constant 0 : index
    %153 = vector.load %arg2[%c225, %c0_53] : memref<240x128xf32, #tpu.memory_space<vmem>>, vector<1x2xf32>
    %cst_54 = arith.constant 9.99999974E-6 : f32
    %154 = vector.broadcast %cst_54 : f32 to vector<1x2xf32>
    %155 = arith.addf %152, %154 : vector<1x2xf32>
    %156 = math.rsqrt %155 : vector<1x2xf32>
    %157 = arith.mulf %153, %156 : vector<1x2xf32>
    %c226 = arith.constant 226 : index
    %c0_55 = arith.constant 0 : index
    %158 = vector.load %arg2[%c226, %c0_55] : memref<240x128xf32, #tpu.memory_space<vmem>>, vector<1x2xf32>
    %159 = arith.mulf %148, %157 : vector<1x2xf32>
    %160 = arith.subf %158, %159 : vector<1x2xf32>
    %161 = vector.broadcast %157 : vector<1x2xf32> to vector<8x2xf32>
    %162 = arith.mulf %141, %161 : vector<8x2xf32>
    %163 = vector.broadcast %160 : vector<1x2xf32> to vector<8x2xf32>
    %164 = arith.addf %162, %163 : vector<8x2xf32>
    %cst_56 = arith.constant 0.000000e+00 : f32
    %165 = vector.broadcast %cst_56 : f32 to vector<8x2xf32>
    %166 = arith.maximumf %164, %165 : vector<8x2xf32>
    %167 = vector.extract_strided_slice %166 {offsets = [0, 0], sizes = [8, 1], strides = [1, 1]} : vector<8x2xf32> to vector<8x1xf32>
    %c120 = arith.constant 120 : index
    %c0_57 = arith.constant 0 : index
    %168 = vector.load %arg2[%c120, %c0_57] : memref<240x128xf32, #tpu.memory_space<vmem>>, vector<1x12xf32>
    %169 = vector.broadcast %167 : vector<8x1xf32> to vector<8x12xf32>
    %170 = vector.broadcast %168 : vector<1x12xf32> to vector<8x12xf32>
    %171 = arith.mulf %169, %170 : vector<8x12xf32>
    %172 = vector.extract_strided_slice %166 {offsets = [0, 1], sizes = [8, 1], strides = [1, 1]} : vector<8x2xf32> to vector<8x1xf32>
    %c121 = arith.constant 121 : index
    %c0_58 = arith.constant 0 : index
    %173 = vector.load %arg2[%c121, %c0_58] : memref<240x128xf32, #tpu.memory_space<vmem>>, vector<1x12xf32>
    %174 = vector.broadcast %172 : vector<8x1xf32> to vector<8x12xf32>
    %175 = vector.broadcast %173 : vector<1x12xf32> to vector<8x12xf32>
    %176 = arith.mulf %174, %175 : vector<8x12xf32>
    %177 = arith.addf %171, %176 : vector<8x12xf32>
    %cst_59 = arith.constant dense<0.000000e+00> : vector<12xf32>
    %178 = vector.multi_reduction <add>, %177, %cst_59 [0] : vector<8x12xf32> to vector<12xf32>
    %179 = vector.shape_cast %178 : vector<12xf32> to vector<1x12xf32>
    %180 = arith.mulf %177, %177 : vector<8x12xf32>
    %cst_60 = arith.constant dense<0.000000e+00> : vector<12xf32>
    %181 = vector.multi_reduction <add>, %180, %cst_60 [0] : vector<8x12xf32> to vector<12xf32>
    %182 = vector.shape_cast %181 : vector<12xf32> to vector<1x12xf32>
    %cst_61 = arith.constant 1.250000e-01 : f32
    %183 = vector.broadcast %cst_61 : f32 to vector<1x12xf32>
    %184 = arith.mulf %179, %183 : vector<1x12xf32>
    %cst_62 = arith.constant 1.250000e-01 : f32
    %185 = vector.broadcast %cst_62 : f32 to vector<1x12xf32>
    %186 = arith.mulf %182, %185 : vector<1x12xf32>
    %187 = arith.mulf %184, %184 : vector<1x12xf32>
    %188 = arith.subf %186, %187 : vector<1x12xf32>
    %c227 = arith.constant 227 : index
    %c0_63 = arith.constant 0 : index
    %189 = vector.load %arg2[%c227, %c0_63] : memref<240x128xf32, #tpu.memory_space<vmem>>, vector<1x12xf32>
    %cst_64 = arith.constant 9.99999974E-6 : f32
    %190 = vector.broadcast %cst_64 : f32 to vector<1x12xf32>
    %191 = arith.addf %188, %190 : vector<1x12xf32>
    %192 = math.rsqrt %191 : vector<1x12xf32>
    %193 = arith.mulf %189, %192 : vector<1x12xf32>
    %c228 = arith.constant 228 : index
    %c0_65 = arith.constant 0 : index
    %194 = vector.load %arg2[%c228, %c0_65] : memref<240x128xf32, #tpu.memory_space<vmem>>, vector<1x12xf32>
    %195 = arith.mulf %184, %193 : vector<1x12xf32>
    %196 = arith.subf %194, %195 : vector<1x12xf32>
    %197 = vector.broadcast %193 : vector<1x12xf32> to vector<8x12xf32>
    %198 = arith.mulf %177, %197 : vector<8x12xf32>
    %199 = vector.broadcast %196 : vector<1x12xf32> to vector<8x12xf32>
    %200 = arith.addf %198, %199 : vector<8x12xf32>
    %cst_66 = arith.constant 0.000000e+00 : f32
    %201 = vector.broadcast %cst_66 : f32 to vector<8x12xf32>
    %202 = arith.maximumf %200, %201 : vector<8x12xf32>
    %c128 = arith.constant 128 : index
    %c0_67 = arith.constant 0 : index
    %203 = vector.load %arg2[%c128, %c0_67] : memref<240x128xf32, #tpu.memory_space<vmem>>, vector<12x12xf32>
    %cst_68 = arith.constant dense<0.000000e+00> : vector<8x12xf32>
    %204 = tpu.matmul %202, %203, %cst_68 {dimension_numbers = #tpu.dot_dimension_numbers<[1], [0], [0], [1], [0, 0, 1, 1], [], []>} : vector<8x12xf32>, vector<12x12xf32>, vector<8x12xf32> -> vector<8x12xf32>
    %cst_69 = arith.constant dense<0.000000e+00> : vector<12xf32>
    %205 = vector.multi_reduction <add>, %204, %cst_69 [0] : vector<8x12xf32> to vector<12xf32>
    %206 = vector.shape_cast %205 : vector<12xf32> to vector<1x12xf32>
    %207 = arith.mulf %204, %204 : vector<8x12xf32>
    %cst_70 = arith.constant dense<0.000000e+00> : vector<12xf32>
    %208 = vector.multi_reduction <add>, %207, %cst_70 [0] : vector<8x12xf32> to vector<12xf32>
    %209 = vector.shape_cast %208 : vector<12xf32> to vector<1x12xf32>
    %cst_71 = arith.constant 1.250000e-01 : f32
    %210 = vector.broadcast %cst_71 : f32 to vector<1x12xf32>
    %211 = arith.mulf %206, %210 : vector<1x12xf32>
    %cst_72 = arith.constant 1.250000e-01 : f32
    %212 = vector.broadcast %cst_72 : f32 to vector<1x12xf32>
    %213 = arith.mulf %209, %212 : vector<1x12xf32>
    %214 = arith.mulf %211, %211 : vector<1x12xf32>
    %215 = arith.subf %213, %214 : vector<1x12xf32>
    %c229 = arith.constant 229 : index
    %c0_73 = arith.constant 0 : index
    %216 = vector.load %arg2[%c229, %c0_73] : memref<240x128xf32, #tpu.memory_space<vmem>>, vector<1x12xf32>
    %cst_74 = arith.constant 9.99999974E-6 : f32
    %217 = vector.broadcast %cst_74 : f32 to vector<1x12xf32>
    %218 = arith.addf %215, %217 : vector<1x12xf32>
    %219 = math.rsqrt %218 : vector<1x12xf32>
    %220 = arith.mulf %216, %219 : vector<1x12xf32>
    %c230 = arith.constant 230 : index
    %c0_75 = arith.constant 0 : index
    %221 = vector.load %arg2[%c230, %c0_75] : memref<240x128xf32, #tpu.memory_space<vmem>>, vector<1x12xf32>
    %222 = arith.mulf %211, %220 : vector<1x12xf32>
    %223 = arith.subf %221, %222 : vector<1x12xf32>
    %224 = vector.broadcast %220 : vector<1x12xf32> to vector<8x12xf32>
    %225 = arith.mulf %204, %224 : vector<8x12xf32>
    %226 = vector.broadcast %223 : vector<1x12xf32> to vector<8x12xf32>
    %227 = arith.addf %225, %226 : vector<8x12xf32>
    %cst_76 = arith.constant 0.000000e+00 : f32
    %228 = vector.broadcast %cst_76 : f32 to vector<8x12xf32>
    %229 = arith.maximumf %227, %228 : vector<8x12xf32>
    %c144 = arith.constant 144 : index
    %c0_77 = arith.constant 0 : index
    %230 = vector.load %arg2[%c144, %c0_77] : memref<240x128xf32, #tpu.memory_space<vmem>>, vector<12x50xf32>
    %cst_78 = arith.constant dense<0.000000e+00> : vector<8x50xf32>
    %231 = tpu.matmul %229, %230, %cst_78 {dimension_numbers = #tpu.dot_dimension_numbers<[1], [0], [0], [1], [0, 0, 1, 1], [], []>} : vector<8x12xf32>, vector<12x50xf32>, vector<8x50xf32> -> vector<8x50xf32>
    %cst_79 = arith.constant dense<0.000000e+00> : vector<50xf32>
    %232 = vector.multi_reduction <add>, %231, %cst_79 [0] : vector<8x50xf32> to vector<50xf32>
    %233 = vector.shape_cast %232 : vector<50xf32> to vector<1x50xf32>
    %234 = arith.mulf %231, %231 : vector<8x50xf32>
    %cst_80 = arith.constant dense<0.000000e+00> : vector<50xf32>
    %235 = vector.multi_reduction <add>, %234, %cst_80 [0] : vector<8x50xf32> to vector<50xf32>
    %236 = vector.shape_cast %235 : vector<50xf32> to vector<1x50xf32>
    %cst_81 = arith.constant 1.250000e-01 : f32
    %237 = vector.broadcast %cst_81 : f32 to vector<1x50xf32>
    %238 = arith.mulf %233, %237 : vector<1x50xf32>
    %cst_82 = arith.constant 1.250000e-01 : f32
    %239 = vector.broadcast %cst_82 : f32 to vector<1x50xf32>
    %240 = arith.mulf %236, %239 : vector<1x50xf32>
    %241 = arith.mulf %238, %238 : vector<1x50xf32>
    %242 = arith.subf %240, %241 : vector<1x50xf32>
    %c231 = arith.constant 231 : index
    %c0_83 = arith.constant 0 : index
    %243 = vector.load %arg2[%c231, %c0_83] : memref<240x128xf32, #tpu.memory_space<vmem>>, vector<1x50xf32>
    %cst_84 = arith.constant 9.99999974E-6 : f32
    %244 = vector.broadcast %cst_84 : f32 to vector<1x50xf32>
    %245 = arith.addf %242, %244 : vector<1x50xf32>
    %246 = math.rsqrt %245 : vector<1x50xf32>
    %247 = arith.mulf %243, %246 : vector<1x50xf32>
    %c232 = arith.constant 232 : index
    %c0_85 = arith.constant 0 : index
    %248 = vector.load %arg2[%c232, %c0_85] : memref<240x128xf32, #tpu.memory_space<vmem>>, vector<1x50xf32>
    %249 = arith.mulf %238, %247 : vector<1x50xf32>
    %250 = arith.subf %248, %249 : vector<1x50xf32>
    %251 = vector.broadcast %247 : vector<1x50xf32> to vector<8x50xf32>
    %252 = arith.mulf %231, %251 : vector<8x50xf32>
    %253 = vector.broadcast %250 : vector<1x50xf32> to vector<8x50xf32>
    %254 = arith.addf %252, %253 : vector<8x50xf32>
    %cst_86 = arith.constant 0.000000e+00 : f32
    %255 = vector.broadcast %cst_86 : f32 to vector<8x50xf32>
    %256 = arith.maximumf %254, %255 : vector<8x50xf32>
    %c160 = arith.constant 160 : index
    %c0_87 = arith.constant 0 : index
    %257 = vector.load %arg2[%c160, %c0_87] : memref<240x128xf32, #tpu.memory_space<vmem>>, vector<50x16xf32>
    %cst_88 = arith.constant dense<0.000000e+00> : vector<8x16xf32>
    %258 = tpu.matmul %256, %257, %cst_88 {dimension_numbers = #tpu.dot_dimension_numbers<[1], [0], [0], [1], [0, 0, 1, 1], [], []>} : vector<8x50xf32>, vector<50x16xf32>, vector<8x16xf32> -> vector<8x16xf32>
    %cst_89 = arith.constant dense<0.000000e+00> : vector<16xf32>
    %259 = vector.multi_reduction <add>, %258, %cst_89 [0] : vector<8x16xf32> to vector<16xf32>
    %260 = vector.shape_cast %259 : vector<16xf32> to vector<1x16xf32>
    %261 = arith.mulf %258, %258 : vector<8x16xf32>
    %cst_90 = arith.constant dense<0.000000e+00> : vector<16xf32>
    %262 = vector.multi_reduction <add>, %261, %cst_90 [0] : vector<8x16xf32> to vector<16xf32>
    %263 = vector.shape_cast %262 : vector<16xf32> to vector<1x16xf32>
    %cst_91 = arith.constant 1.250000e-01 : f32
    %264 = vector.broadcast %cst_91 : f32 to vector<1x16xf32>
    %265 = arith.mulf %260, %264 : vector<1x16xf32>
    %cst_92 = arith.constant 1.250000e-01 : f32
    %266 = vector.broadcast %cst_92 : f32 to vector<1x16xf32>
    %267 = arith.mulf %263, %266 : vector<1x16xf32>
    %268 = arith.mulf %265, %265 : vector<1x16xf32>
    %269 = arith.subf %267, %268 : vector<1x16xf32>
    %c233 = arith.constant 233 : index
    %c0_93 = arith.constant 0 : index
    %270 = vector.load %arg2[%c233, %c0_93] : memref<240x128xf32, #tpu.memory_space<vmem>>, vector<1x16xf32>
    %cst_94 = arith.constant 9.99999974E-6 : f32
    %271 = vector.broadcast %cst_94 : f32 to vector<1x16xf32>
    %272 = arith.addf %269, %271 : vector<1x16xf32>
    %273 = math.rsqrt %272 : vector<1x16xf32>
    %274 = arith.mulf %270, %273 : vector<1x16xf32>
    %c234 = arith.constant 234 : index
    %c0_95 = arith.constant 0 : index
    %275 = vector.load %arg2[%c234, %c0_95] : memref<240x128xf32, #tpu.memory_space<vmem>>, vector<1x16xf32>
    %276 = arith.mulf %265, %274 : vector<1x16xf32>
    %277 = arith.subf %275, %276 : vector<1x16xf32>
    %278 = vector.broadcast %274 : vector<1x16xf32> to vector<8x16xf32>
    %279 = arith.mulf %258, %278 : vector<8x16xf32>
    %280 = vector.broadcast %277 : vector<1x16xf32> to vector<8x16xf32>
    %281 = arith.addf %279, %280 : vector<8x16xf32>
    %cst_96 = arith.constant 0.000000e+00 : f32
    %282 = vector.broadcast %cst_96 : f32 to vector<8x108xf32>
    %283 = tpu.concatenate %281, %124, %125, %282 in 1 : vector<8x16xf32>, vector<8x2xf32>, vector<8x2xf32>, vector<8x108xf32> -> vector<8x128xf32>
    %c0_97 = arith.constant 0 : index
    %c0_98 = arith.constant 0 : index
    %284 = vector.load %arg3[%c0_97, %c0_98] : memref<8x128xf32, #tpu.memory_space<vmem>>, vector<8x128xf32>
    tpu.vector_store %arg3[%c0_97, %c0_98], %283 {strides = array<i32>} : memref<8x128xf32, #tpu.memory_space<vmem>>, vector<8x128xf32>,
    return
  }
}

</mosaic_0001>

<llo_original>
// kernel: tpu_custom_call.1
$region0: #{tpu_custom_call.1}
  #allocation0 [shape = 'u32[]', space=smem, size = 0x4, offset = 0x4, fixed_abs, tag = 'smem constant byte address 0x4 - core index']
  #allocation1 [shape = 'u32[144,128]{1,0:T(1,128)}', space=vmem, size = 0x12000, scoped, tag = 'internal scratch']
  %s0 = inlined_call_operand.vmem [shape: f32[8,16], index: 0, kind: input, shape index: {}]
  %s1 = inlined_call_operand.vmem [shape: f32[8,2], index: 1, kind: input, shape index: {}]
  %s2 = inlined_call_operand.hbm [shape: f32[240,128], index: 2, kind: input, shape index: {}]
  %s3 = inlined_call_operand.hbm [shape: f32[8,128], index: 3, kind: output, shape index: {}]
  %s4 = sld [smem:[#allocation0]]
  $region26: #{tpu_custom_call.1} parent=0
    _
  %s6 = ssub.s32 1, %s4
  %s7 = scalar_select 0, %s6, %s4
  $region1: #{tpu_custom_call.1} parent=0
    #allocation2 [shape = 'u8[122880]{0}', space=vmem, size = 0x1e000, scoped, tag = 'input window, operand 2, single buffered']
    #allocation3 [shape = 's32[1]{0}', space=sflag, size = 0x4, scoped, tag = 'scoped memory for tpu_custom_call.1']
    #allocation4 [shape = 's32[1]{0}', space=sflag, size = 0x4, scoped, tag = 'scoped memory for tpu_custom_call.1']
    #allocation5 [shape = 'u8[4096]{0}', space=vmem, size = 0x1000, scoped, tag = 'output window, operand 0, single buffered']
    %8 = vsyncpa [#allocation3], 0
    %9 = vsyncpa [#allocation4], 0
    // Predicated region
    $region2: #{tpu_custom_call.1} parent=1 // pred_check
      _
    $region3: #{tpu_custom_call.1} parent=1 // pred_check_branch
      %11 = sbr.rel (0) target = $region5
    $region4: #{tpu_custom_call.1} parent=1 // pred_region
      _
    $region5: #{tpu_custom_call.1} parent=1 // pred_fallthru
      _
    // Predicated region
    $region6: #{tpu_custom_call.1} parent=1 // pred_check
      _
    $region7: #{tpu_custom_call.1} parent=1 // pred_check_branch
      %13 = sbr.rel (0) target = $region9
    $region8: #{tpu_custom_call.1} parent=1 // pred_region
      _
    $region9: #{tpu_custom_call.1} parent=1 // pred_fallthru
      _
    // Predicated region
    $region10: #{tpu_custom_call.1} parent=1 // pred_check
      _
    $region11: #{tpu_custom_call.1} parent=1 // pred_check_branch
      %15 = sbr.rel (0) target = $region13
    $region12: #{tpu_custom_call.1} parent=1 // pred_region
      %s17 = ssub.s32 3840, 3840
      %18 = vsyncadd [#allocation3], %s17
      %s19 = sshll.u32 [#allocation2], 4
      %s20 = int_to_ptr.vmem [resolvable:$true] %s19
      %25 = dma.hbm_to_vmem [thread:$0]  %s2, 3840, %s20, [#allocation3], 128, 128, 8
    $region13: #{tpu_custom_call.1} parent=1 // pred_fallthru
      _
    // Predicated region
    $region14: #{tpu_custom_call.1} parent=1 // pred_check
      _
    $region15: #{tpu_custom_call.1} parent=1 // pred_check_branch
      %27 = sbr.rel (0) target = $region17
    $region16: #{tpu_custom_call.1} parent=1 // pred_region
      %28 = dma.done [#allocation3], 3840
    $region17: #{tpu_custom_call.1} parent=1 // pred_fallthru
      _
    %v29 = vld [vmem:[%s0] sm:$0xff]
    %v30 = vld [vmem:[%s1] sm:$0xff]
    %v31 = vld [vmem:[#allocation2] sm:$0xff]
    %v32 = vld [vmem:[#allocation2 + $0x8] sm:$0xff]
    %vm33 = vcmask 130048
    %v35 = vsel %vm33, %v29, 0
    %37 = vmatprep.subr.mxu0 0.0
    %38 = vmatpush1.msra.mxu0 0.0
    %39 = vmatprep.subr.mxu0 0.0
    %40 = vmatpush1.msra.mxu0 0.0
    %41 = vmatprep.subr.mxu0 0.0
    %42 = vmatpush1.msra.mxu0 0.0
    %43 = vmatprep.subr.mxu0 0.0
    %44 = vmatpush1.msra.mxu0 0.0
    %45 = vmatprep.subr.mxu0 0.0
    %46 = vmatpush1.msra.mxu0 0.0
    %47 = vmatprep.subr.mxu0 0.0
    %48 = vmatpush1.msra.mxu0 0.0
    %49 = vmatprep.subr.mxu0 0.0
    %50 = vmatpush1.msra.mxu0 0.0
    %51 = vmatprep.subr.mxu0 0.0
    %52 = vmatpush1.msra.mxu0 0.0
    %53 = vmatprep.subr.mxu0 0.0
    %54 = vmatpush1.msra.mxu0 0.0
    %55 = vmatprep.subr.mxu0 0.0
    %56 = vmatpush1.msra.mxu0 0.0
    %57 = vmatprep.subr.mxu0 0.0
    %58 = vmatpush1.msra.mxu0 0.0
    %59 = vmatprep.subr.mxu0 0.0
    %60 = vmatpush1.msra.mxu0 0.0
    %61 = vmatprep.subr.mxu0 0.0
    %62 = vmatpush1.msra.mxu0 0.0
    %63 = vmatprep.subr.mxu0 0.0
    %64 = vmatpush1.msra.mxu0 0.0
    %65 = vmatprep.subr.mxu0 0.0
    %66 = vmatpush1.msra.mxu0 %v32
    %67 = vmatprep.subr.mxu0 0.0
    %68 = vmatpush1.msra.mxu0 %v31
    %69 = vmatprep.subr.mxu0 0.0
    %70 = vmatpush2.msra.mxu0 0.0
    %71 = vmatprep.subr.mxu0 0.0
    %72 = vmatpush2.msra.mxu0 0.0
    %73 = vmatprep.subr.mxu0 0.0
    %74 = vmatpush2.msra.mxu0 0.0
    %75 = vmatprep.subr.mxu0 0.0
    %76 = vmatpush2.msra.mxu0 0.0
    %77 = vmatprep.subr.mxu0 0.0
    %78 = vmatpush2.msra.mxu0 0.0
    %79 = vmatprep.subr.mxu0 0.0
    %80 = vmatpush2.msra.mxu0 0.0
    %81 = vmatprep.subr.mxu0 0.0
    %82 = vmatpush2.msra.mxu0 0.0
    %83 = vmatprep.subr.mxu0 0.0
    %84 = vmatpush2.msra.mxu0 0.0
    %85 = vmatprep.subr.mxu0 0.0
    %86 = vmatpush2.msra.mxu0 0.0
    %87 = vmatprep.subr.mxu0 0.0
    %88 = vmatpush2.msra.mxu0 0.0
    %89 = vmatprep.subr.mxu0 0.0
    %90 = vmatpush2.msra.mxu0 0.0
    %91 = vmatprep.subr.mxu0 0.0
    %92 = vmatpush2.msra.mxu0 0.0
    %93 = vmatprep.subr.mxu0 0.0
    %94 = vmatpush2.msra.mxu0 0.0
    %95 = vmatprep.subr.mxu0 0.0
    %96 = vmatpush2.msra.mxu0 0.0
    %97 = vmatprep.subr.mxu0 0.0
    %98 = vmatpush2.msra.mxu0 0.0
    %99 = vmatprep.subr.mxu0 0.0
    %100 = vmatpush2.msra.mxu0 0.0
    %101 = vmatprep.mubr.f32.mxu0 0.0
    %102 = vmatmul.mubr.f32.gmra.mxu0 %v35
    %v103 = vpop.f32.mrf.mxu0
    %v104 = vadd.f32 0.0, %v103
    %v105 = vpop.f32.mrf.mxu0
    %106 = vdwg.mxu0
    %vm107 = vcmask 408576
    %v108 = vsel %vm107, %v104, 0.0
    %v109 = vrot.slane %v108, 4
    %v110 = vadd.f32 %v108, %v109
    %v111 = vrot.slane %v110, 2
    %v112 = vadd.f32 %v110, %v111
    %v113 = vrot.slane %v112, 1
    %v114 = vadd.f32 %v112, %v113
    %v115 = vmul.f32 %v104, %v104
    %v116 = vsel %vm107, %v115, 0.0
    %v117 = vrot.slane %v116, 4
    %v118 = vadd.f32 %v116, %v117
    %v119 = vrot.slane %v118, 2
    %v120 = vadd.f32 %v118, %v119
    %v121 = vrot.slane %v120, 1
    %v122 = vadd.f32 %v120, %v121
    %v123 = vmul.f32 %v114, 0.125
    %v124 = vmul.f32 %v122, 0.125
    %v125 = vmul.f32 %v123, %v123
    %v126 = vsub.f32 %v124, %v125
    %v127 = vld [vmem:[#allocation2 + $0xd8] sm:$0x1]
    %v128 = vadd.f32 %v126, 1e-05
    %v129 = vrsqrt.pop %v128
    %v130 = vmul.f32 %v127, %v129
    %v131 = vld [vmem:[#allocation2 + $0xd9] sm:$0x1]
    %v132 = vmul.f32 %v123, %v130
    %v133 = vsub.f32 %v131, %v132
    %v134 = vlaneseq
    %v135 = vshrl.u32 %v134, 7
    %v136 = vsub.s32 0, %v135
    %v137 = vrot.slane %v130, %v136
    %v138 = vmul.f32 %v104, %v137
    %v139 = vlaneseq
    %v140 = vshrl.u32 %v139, 7
    %v141 = vsub.s32 0, %v140
    %v142 = vrot.slane %v133, %v141
    %v143 = vadd.f32 %v138, %v142
    %v144 = vmax.f32 %v143, 0.0
    %v145 = vld [vmem:[#allocation2 + $0x10] sm:$0xff]
    %v146 = vld [vmem:[#allocation2 + $0x18] sm:$0xff]
    %v147 = vld [vmem:[#allocation2 + $0x20] sm:$0xff]
    %v148 = vld [vmem:[#allocation2 + $0x28] sm:$0xff]
    %v149 = vld [vmem:[#allocation2 + $0x30] sm:$0xff]
    %v150 = vld [vmem:[#allocation2 + $0x38] sm:$0xff]
    %v151 = vld [vmem:[#allocation2 + $0x40] sm:$0x3]
    %v153 = vsel %vm107, %v144, 0
    %vm155 = vcmask 1041408
    %v157 = vsel %vm155, %v151, 0
    %159 = vmatprep.subr.mxu0 0.0
    %160 = vmatpush1.msra.mxu0 0.0
    %161 = vmatprep.subr.mxu0 0.0
    %162 = vmatpush1.msra.mxu0 0.0
    %163 = vmatprep.subr.mxu0 0.0
    %164 = vmatpush1.msra.mxu0 0.0
    %165 = vmatprep.subr.mxu0 0.0
    %166 = vmatpush1.msra.mxu0 0.0
    %167 = vmatprep.subr.mxu0 0.0
    %168 = vmatpush1.msra.mxu0 0.0
    %169 = vmatprep.subr.mxu0 0.0
    %170 = vmatpush1.msra.mxu0 0.0
    %171 = vmatprep.subr.mxu0 0.0
    %172 = vmatpush1.msra.mxu0 0.0
    %173 = vmatprep.subr.mxu0 0.0
    %174 = vmatpush1.msra.mxu0 0.0
    %175 = vmatprep.subr.mxu0 0.0
    %176 = vmatpush1.msra.mxu0 0.0
    %177 = vmatprep.subr.mxu0 0.0
    %178 = vmatpush1.msra.mxu0 %v157
    %179 = vmatprep.subr.mxu0 0.0
    %180 = vmatpush1.msra.mxu0 %v150
    %181 = vmatprep.subr.mxu0 0.0
    %182 = vmatpush1.msra.mxu0 %v149
    %183 = vmatprep.subr.mxu0 0.0
    %184 = vmatpush1.msra.mxu0 %v148
    %185 = vmatprep.subr.mxu0 0.0
    %186 = vmatpush1.msra.mxu0 %v147
    %187 = vmatprep.subr.mxu0 0.0
    %188 = vmatpush1.msra.mxu0 %v146
    %189 = vmatprep.subr.mxu0 0.0
    %190 = vmatpush1.msra.mxu0 %v145
    %191 = vmatprep.subr.mxu0 0.0
    %192 = vmatpush2.msra.mxu0 0.0
    %193 = vmatprep.subr.mxu0 0.0
    %194 = vmatpush2.msra.mxu0 0.0
    %195 = vmatprep.subr.mxu0 0.0
    %196 = vmatpush2.msra.mxu0 0.0
    %197 = vmatprep.subr.mxu0 0.0
    %198 = vmatpush2.msra.mxu0 0.0
    %199 = vmatprep.subr.mxu0 0.0
    %200 = vmatpush2.msra.mxu0 0.0
    %201 = vmatprep.subr.mxu0 0.0
    %202 = vmatpush2.msra.mxu0 0.0
    %203 = vmatprep.subr.mxu0 0.0
    %204 = vmatpush2.msra.mxu0 0.0
    %205 = vmatprep.subr.mxu0 0.0
    %206 = vmatpush2.msra.mxu0 0.0
    %207 = vmatprep.subr.mxu0 0.0
    %208 = vmatpush2.msra.mxu0 0.0
    %209 = vmatprep.subr.mxu0 0.0
    %210 = vmatpush2.msra.mxu0 0.0
    %211 = vmatprep.subr.mxu0 0.0
    %212 = vmatpush2.msra.mxu0 0.0
    %213 = vmatprep.subr.mxu0 0.0
    %214 = vmatpush2.msra.mxu0 0.0
    %215 = vmatprep.subr.mxu0 0.0
    %216 = vmatpush2.msra.mxu0 0.0
    %217 = vmatprep.subr.mxu0 0.0
    %218 = vmatpush2.msra.mxu0 0.0
    %219 = vmatprep.subr.mxu0 0.0
    %220 = vmatpush2.msra.mxu0 0.0
    %221 = vmatprep.subr.mxu0 0.0
    %222 = vmatpush2.msra.mxu0 0.0
    %223 = vmatprep.mubr.f32.mxu0 0.0
    %224 = vmatmul.mubr.f32.gmra.mxu0 %v153
    %v225 = vpop.f32.mrf.mxu0
    %v226 = vadd.f32 0.0, %v225
    %v227 = vpop.f32.mrf.mxu0
    %228 = vdwg.mxu0
    %vm229 = vcmask 97280
    %v230 = vsel %vm229, %v226, 0.0
    %v231 = vrot.slane %v230, 4
    %v232 = vadd.f32 %v230, %v231
    %v233 = vrot.slane %v232, 2
    %v234 = vadd.f32 %v232, %v233
    %v235 = vrot.slane %v234, 1
    %v236 = vadd.f32 %v234, %v235
    %v237 = vmul.f32 %v226, %v226
    %v238 = vsel %vm229, %v237, 0.0
    %v239 = vrot.slane %v238, 4
    %v240 = vadd.f32 %v238, %v239
    %v241 = vrot.slane %v240, 2
    %v242 = vadd.f32 %v240, %v241
    %v243 = vrot.slane %v242, 1
    %v244 = vadd.f32 %v242, %v243
    %v245 = vmul.f32 %v236, 0.125
    %v246 = vmul.f32 %v244, 0.125
    %v247 = vmul.f32 %v245, %v245
    %v248 = vsub.f32 %v246, %v247
    %v249 = vld [vmem:[#allocation2 + $0xda] sm:$0x1]
    %v250 = vadd.f32 %v248, 1e-05
    %v251 = vrsqrt.pop %v250
    %v252 = vmul.f32 %v249, %v251
    %v253 = vld [vmem:[#allocation2 + $0xdb] sm:$0x1]
    %v254 = vmul.f32 %v245, %v252
    %v255 = vsub.f32 %v253, %v254
    %v256 = vlaneseq
    %v257 = vshrl.u32 %v256, 7
    %v258 = vsub.s32 0, %v257
    %v259 = vrot.slane %v252, %v258
    %v260 = vmul.f32 %v226, %v259
    %v261 = vlaneseq
    %v262 = vshrl.u32 %v261, 7
    %v263 = vsub.s32 0, %v262
    %v264 = vrot.slane %v255, %v263
    %v265 = vadd.f32 %v260, %v264
    %v266 = vmax.f32 %v265, 0.0
    %v267 = vld [vmem:[#allocation2 + $0x48] sm:$0xff]
    %v268 = vld [vmem:[#allocation2 + $0x50] sm:$0xf]
    %v270 = vsel %vm229, %v266, 0
    %vm272 = vcmask 1043456
    %v274 = vsel %vm272, %v268, 0
    %276 = vmatprep.subr.mxu0 0.0
    %277 = vmatpush1.msra.mxu0 0.0
    %278 = vmatprep.subr.mxu0 0.0
    %279 = vmatpush1.msra.mxu0 0.0
    %280 = vmatprep.subr.mxu0 0.0
    %281 = vmatpush1.msra.mxu0 0.0
    %282 = vmatprep.subr.mxu0 0.0
    %283 = vmatpush1.msra.mxu0 0.0
    %284 = vmatprep.subr.mxu0 0.0
    %285 = vmatpush1.msra.mxu0 0.0
    %286 = vmatprep.subr.mxu0 0.0
    %287 = vmatpush1.msra.mxu0 0.0
    %288 = vmatprep.subr.mxu0 0.0
    %289 = vmatpush1.msra.mxu0 0.0
    %290 = vmatprep.subr.mxu0 0.0
    %291 = vmatpush1.msra.mxu0 0.0
    %292 = vmatprep.subr.mxu0 0.0
    %293 = vmatpush1.msra.mxu0 0.0
    %294 = vmatprep.subr.mxu0 0.0
    %295 = vmatpush1.msra.mxu0 0.0
    %296 = vmatprep.subr.mxu0 0.0
    %297 = vmatpush1.msra.mxu0 0.0
    %298 = vmatprep.subr.mxu0 0.0
    %299 = vmatpush1.msra.mxu0 0.0
    %300 = vmatprep.subr.mxu0 0.0
    %301 = vmatpush1.msra.mxu0 0.0
    %302 = vmatprep.subr.mxu0 0.0
    %303 = vmatpush1.msra.mxu0 0.0
    %304 = vmatprep.subr.mxu0 0.0
    %305 = vmatpush1.msra.mxu0 %v274
    %306 = vmatprep.subr.mxu0 0.0
    %307 = vmatpush1.msra.mxu0 %v267
    %308 = vmatprep.subr.mxu0 0.0
    %309 = vmatpush2.msra.mxu0 0.0
    %310 = vmatprep.subr.mxu0 0.0
    %311 = vmatpush2.msra.mxu0 0.0
    %312 = vmatprep.subr.mxu0 0.0
    %313 = vmatpush2.msra.mxu0 0.0
    %314 = vmatprep.subr.mxu0 0.0
    %315 = vmatpush2.msra.mxu0 0.0
    %316 = vmatprep.subr.mxu0 0.0
    %317 = vmatpush2.msra.mxu0 0.0
    %318 = vmatprep.subr.mxu0 0.0
    %319 = vmatpush2.msra.mxu0 0.0
    %320 = vmatprep.subr.mxu0 0.0
    %321 = vmatpush2.msra.mxu0 0.0
    %322 = vmatprep.subr.mxu0 0.0
    %323 = vmatpush2.msra.mxu0 0.0
    %324 = vmatprep.subr.mxu0 0.0
    %325 = vmatpush2.msra.mxu0 0.0
    %326 = vmatprep.subr.mxu0 0.0
    %327 = vmatpush2.msra.mxu0 0.0
    %328 = vmatprep.subr.mxu0 0.0
    %329 = vmatpush2.msra.mxu0 0.0
    %330 = vmatprep.subr.mxu0 0.0
    %331 = vmatpush2.msra.mxu0 0.0
    %332 = vmatprep.subr.mxu0 0.0
    %333 = vmatpush2.msra.mxu0 0.0
    %334 = vmatprep.subr.mxu0 0.0
    %335 = vmatpush2.msra.mxu0 0.0
    %336 = vmatprep.subr.mxu0 0.0
    %337 = vmatpush2.msra.mxu0 0.0
    %338 = vmatprep.subr.mxu0 0.0
    %339 = vmatpush2.msra.mxu0 0.0
    %340 = vmatprep.mubr.f32.mxu0 0.0
    %341 = vmatmul.mubr.f32.gmra.mxu0 %v270
    %v342 = vpop.f32.mrf.mxu0
    %v343 = vadd.f32 0.0, %v342
    %v344 = vpop.f32.mrf.mxu0
    %345 = vdwg.mxu0
    %v346 = vsel %vm229, %v343, 0.0
    %v347 = vrot.slane %v346, 4
    %v348 = vadd.f32 %v346, %v347
    %v349 = vrot.slane %v348, 2
    %v350 = vadd.f32 %v348, %v349
    %v351 = vrot.slane %v350, 1
    %v352 = vadd.f32 %v350, %v351
    %v353 = vmul.f32 %v343, %v343
    %v354 = vsel %vm229, %v353, 0.0
    %v355 = vrot.slane %v354, 4
    %v356 = vadd.f32 %v354, %v355
    %v357 = vrot.slane %v356, 2
    %v358 = vadd.f32 %v356, %v357
    %v359 = vrot.slane %v358, 1
    %v360 = vadd.f32 %v358, %v359
    %v361 = vmul.f32 %v352, 0.125
    %v362 = vmul.f32 %v360, 0.125
    %v363 = vmul.f32 %v361, %v361
    %v364 = vsub.f32 %v362, %v363
    %v365 = vld [vmem:[#allocation2 + $0xdc] sm:$0x1]
    %v366 = vadd.f32 %v364, 1e-05
    %v367 = vrsqrt.pop %v366
    %v368 = vmul.f32 %v365, %v367
    %v369 = vld [vmem:[#allocation2 + $0xdd] sm:$0x1]
    %v370 = vmul.f32 %v361, %v368
    %v371 = vsub.f32 %v369, %v370
    %v372 = vlaneseq
    %v373 = vshrl.u32 %v372, 7
    %v374 = vsub.s32 0, %v373
    %v375 = vrot.slane %v368, %v374
    %v376 = vmul.f32 %v343, %v375
    %v377 = vlaneseq
    %v378 = vshrl.u32 %v377, 7
    %v379 = vsub.s32 0, %v378
    %v380 = vrot.slane %v371, %v379
    %v381 = vadd.f32 %v376, %v380
    %v382 = vmax.f32 %v381, 0.0
    %v383 = vld [vmem:[#allocation2 + $0x58] sm:$0xff]
    %v384 = vld [vmem:[#allocation2 + $0x60] sm:$0xf]
    %v386 = vsel %vm229, %v382, 0
    %v389 = vsel %vm272, %v384, 0
    %391 = vmatprep.subr.mxu0 0.0
    %392 = vmatpush1.msra.mxu0 0.0
    %393 = vmatprep.subr.mxu0 0.0
    %394 = vmatpush1.msra.mxu0 0.0
    %395 = vmatprep.subr.mxu0 0.0
    %396 = vmatpush1.msra.mxu0 0.0
    %397 = vmatprep.subr.mxu0 0.0
    %398 = vmatpush1.msra.mxu0 0.0
    %399 = vmatprep.subr.mxu0 0.0
    %400 = vmatpush1.msra.mxu0 0.0
    %401 = vmatprep.subr.mxu0 0.0
    %402 = vmatpush1.msra.mxu0 0.0
    %403 = vmatprep.subr.mxu0 0.0
    %404 = vmatpush1.msra.mxu0 0.0
    %405 = vmatprep.subr.mxu0 0.0
    %406 = vmatpush1.msra.mxu0 0.0
    %407 = vmatprep.subr.mxu0 0.0
    %408 = vmatpush1.msra.mxu0 0.0
    %409 = vmatprep.subr.mxu0 0.0
    %410 = vmatpush1.msra.mxu0 0.0
    %411 = vmatprep.subr.mxu0 0.0
    %412 = vmatpush1.msra.mxu0 0.0
    %413 = vmatprep.subr.mxu0 0.0
    %414 = vmatpush1.msra.mxu0 0.0
    %415 = vmatprep.subr.mxu0 0.0
    %416 = vmatpush1.msra.mxu0 0.0
    %417 = vmatprep.subr.mxu0 0.0
    %418 = vmatpush1.msra.mxu0 0.0
    %419 = vmatprep.subr.mxu0 0.0
    %420 = vmatpush1.msra.mxu0 %v389
    %421 = vmatprep.subr.mxu0 0.0
    %422 = vmatpush1.msra.mxu0 %v383
    %423 = vmatprep.subr.mxu0 0.0
    %424 = vmatpush2.msra.mxu0 0.0
    %425 = vmatprep.subr.mxu0 0.0
    %426 = vmatpush2.msra.mxu0 0.0
    %427 = vmatprep.subr.mxu0 0.0
    %428 = vmatpush2.msra.mxu0 0.0
    %429 = vmatprep.subr.mxu0 0.0
    %430 = vmatpush2.msra.mxu0 0.0
    %431 = vmatprep.subr.mxu0 0.0
    %432 = vmatpush2.msra.mxu0 0.0
    %433 = vmatprep.subr.mxu0 0.0
    %434 = vmatpush2.msra.mxu0 0.0
    %435 = vmatprep.subr.mxu0 0.0
    %436 = vmatpush2.msra.mxu0 0.0
    %437 = vmatprep.subr.mxu0 0.0
    %438 = vmatpush2.msra.mxu0 0.0
    %439 = vmatprep.subr.mxu0 0.0
    %440 = vmatpush2.msra.mxu0 0.0
    %441 = vmatprep.subr.mxu0 0.0
    %442 = vmatpush2.msra.mxu0 0.0
    %443 = vmatprep.subr.mxu0 0.0
    %444 = vmatpush2.msra.mxu0 0.0
    %445 = vmatprep.subr.mxu0 0.0
    %446 = vmatpush2.msra.mxu0 0.0
    %447 = vmatprep.subr.mxu0 0.0
    %448 = vmatpush2.msra.mxu0 0.0
    %449 = vmatprep.subr.mxu0 0.0
    %450 = vmatpush2.msra.mxu0 0.0
    %451 = vmatprep.subr.mxu0 0.0
    %452 = vmatpush2.msra.mxu0 0.0
    %453 = vmatprep.subr.mxu0 0.0
    %454 = vmatpush2.msra.mxu0 0.0
    %455 = vmatprep.mubr.f32.mxu0 0.0
    %456 = vmatmul.mubr.f32.gmra.mxu0 %v386
    %v457 = vpop.f32.mrf.mxu0
    %v458 = vadd.f32 0.0, %v457
    %v459 = vpop.f32.mrf.mxu0
    %460 = vdwg.mxu0
    %vm461 = vcmask 15360
    %v462 = vsel %vm461, %v458, 0.0
    %v463 = vrot.slane %v462, 4
    %v464 = vadd.f32 %v462, %v463
    %v465 = vrot.slane %v464, 2
    %v466 = vadd.f32 %v464, %v465
    %v467 = vrot.slane %v466, 1
    %v468 = vadd.f32 %v466, %v467
    %v469 = vmul.f32 %v458, %v458
    %v470 = vsel %vm461, %v469, 0.0
    %v471 = vrot.slane %v470, 4
    %v472 = vadd.f32 %v470, %v471
    %v473 = vrot.slane %v472, 2
    %v474 = vadd.f32 %v472, %v473
    %v475 = vrot.slane %v474, 1
    %v476 = vadd.f32 %v474, %v475
    %v477 = vmul.f32 %v468, 0.125
    %v478 = vmul.f32 %v476, 0.125
    %v479 = vmul.f32 %v477, %v477
    %v480 = vsub.f32 %v478, %v479
    %v481 = vld [vmem:[#allocation2 + $0xde] sm:$0x1]
    %v482 = vadd.f32 %v480, 1e-05
    %v483 = vrsqrt.pop %v482
    %v484 = vmul.f32 %v481, %v483
    %v485 = vld [vmem:[#allocation2 + $0xdf] sm:$0x1]
    %v486 = vmul.f32 %v477, %v484
    %v487 = vsub.f32 %v485, %v486
    %v488 = vlaneseq
    %v489 = vshrl.u32 %v488, 7
    %v490 = vsub.s32 0, %v489
    %v491 = vrot.slane %v484, %v490
    %v492 = vmul.f32 %v458, %v491
    %v493 = vlaneseq
    %v494 = vshrl.u32 %v493, 7
    %v495 = vsub.s32 0, %v494
    %v496 = vrot.slane %v487, %v495
    %v497 = vadd.f32 %v492, %v496
    %v498 = vmax.f32 %v497, 0.0
    %v499 = vld [vmem:[#allocation2 + $0x68] sm:$0x1]
    %501 = vset.pattern.permute.xlu0 0
    %502 = vperm.xlu0 %501, %v498
    %v503 = vpop.permute.xlu0 %502
    %v505 = vlaneseq
    %v506 = vshrl.u32 %v505, 7
    %v507 = vsub.s32 0, %v506
    %v508 = vrot.slane %v499, %v507
    %v509 = vmul.f32 %v503, %v508
    %v510 = vld [vmem:[#allocation2 + $0x69] sm:$0x1]
    %511 = vset.pattern.permute.xlu0 1
    %512 = vperm.xlu0 %511, %v498
    %v513 = vpop.permute.xlu0 %512
    %v515 = vlaneseq
    %v516 = vshrl.u32 %v515, 7
    %v517 = vsub.s32 0, %v516
    %v518 = vrot.slane %v510, %v517
    %v519 = vmul.f32 %v513, %v518
    %v520 = vadd.f32 %v509, %v519
    %v521 = vld [vmem:[#allocation2 + $0xe0] sm:$0x1]
    %v522 = vlaneseq
    %v523 = vshrl.u32 %v522, 7
    %v524 = vsub.s32 0, %v523
    %v525 = vrot.slane %v521, %v524
    %v526 = vadd.f32 %v520, %v525
    %v527 = vmul.f32 %v526, 0.5
    %v528 = vmul.f32 %v527, 1.442695
    %v529 = vpow.pop %v528
    %531 = vrot.lane.b32.xlu0 %v529, 126
    %v532 = vpop.permute.xlu0 %531
    %v534 = vmul.f32 %v30, %v532
    %v535 = vadd.f32 %v534, %v526
    %v536 = vld [vmem:[#allocation2 + $0x70] sm:$0x1]
    %538 = vset.pattern.permute.xlu0 0
    %539 = vperm.xlu0 %538, %v535
    %v540 = vpop.permute.xlu0 %539
    %v542 = vlaneseq
    %v543 = vshrl.u32 %v542, 7
    %v544 = vsub.s32 0, %v543
    %v545 = vrot.slane %v536, %v544
    %v546 = vmul.f32 %v540, %v545
    %v547 = vld [vmem:[#allocation2 + $0x71] sm:$0x1]
    %548 = vset.pattern.permute.xlu0 1
    %549 = vperm.xlu0 %548, %v535
    %v550 = vpop.permute.xlu0 %549
    %v552 = vlaneseq
    %v553 = vshrl.u32 %v552, 7
    %v554 = vsub.s32 0, %v553
    %v555 = vrot.slane %v547, %v554
    %v556 = vmul.f32 %v550, %v555
    %v557 = vadd.f32 %v546, %v556
    %v558 = vsel %vm461, %v557, 0.0
    %v559 = vrot.slane %v558, 4
    %v560 = vadd.f32 %v558, %v559
    %v561 = vrot.slane %v560, 2
    %v562 = vadd.f32 %v560, %v561
    %v563 = vrot.slane %v562, 1
    %v564 = vadd.f32 %v562, %v563
    %v565 = vmul.f32 %v557, %v557
    %v566 = vsel %vm461, %v565, 0.0
    %v567 = vrot.slane %v566, 4
    %v568 = vadd.f32 %v566, %v567
    %v569 = vrot.slane %v568, 2
    %v570 = vadd.f32 %v568, %v569
    %v571 = vrot.slane %v570, 1
    %v572 = vadd.f32 %v570, %v571
    %v573 = vmul.f32 %v564, 0.125
    %v574 = vmul.f32 %v572, 0.125
    %v575 = vmul.f32 %v573, %v573
    %v576 = vsub.f32 %v574, %v575
    %v577 = vld [vmem:[#allocation2 + $0xe1] sm:$0x1]
    %v578 = vadd.f32 %v576, 1e-05
    %v579 = vrsqrt.pop %v578
    %v580 = vmul.f32 %v577, %v579
    %v581 = vld [vmem:[#allocation2 + $0xe2] sm:$0x1]
    %v582 = vmul.f32 %v573, %v580
    %v583 = vsub.f32 %v581, %v582
    %v584 = vlaneseq
    %v585 = vshrl.u32 %v584, 7
    %v586 = vsub.s32 0, %v585
    %v587 = vrot.slane %v580, %v586
    %v588 = vmul.f32 %v557, %v587
    %v589 = vlaneseq
    %v590 = vshrl.u32 %v589, 7
    %v591 = vsub.s32 0, %v590
    %v592 = vrot.slane %v583, %v591
    %v593 = vadd.f32 %v588, %v592
    %v594 = vmax.f32 %v593, 0.0
    %v595 = vld [vmem:[#allocation2 + $0x78] sm:$0x1]
    %597 = vset.pattern.permute.xlu0 0
    %598 = vperm.xlu0 %597, %v594
    %v599 = vpop.permute.xlu0 %598
    %v601 = vlaneseq
    %v602 = vshrl.u32 %v601, 7
    %v603 = vsub.s32 0, %v602
    %v604 = vrot.slane %v595, %v603
    %v605 = vmul.f32 %v599, %v604
    %v606 = vld [vmem:[#allocation2 + $0x79] sm:$0x1]
    %607 = vset.pattern.permute.xlu0 1
    %608 = vperm.xlu0 %607, %v594
    %v609 = vpop.permute.xlu0 %608
    %v611 = vlaneseq
    %v612 = vshrl.u32 %v611, 7
    %v613 = vsub.s32 0, %v612
    %v614 = vrot.slane %v606, %v613
    %v615 = vmul.f32 %v609, %v614
    %v616 = vadd.f32 %v605, %v615
    %v617 = vsel %vm229, %v616, 0.0
    %v618 = vrot.slane %v617, 4
    %v619 = vadd.f32 %v617, %v618
    %v620 = vrot.slane %v619, 2
    %v621 = vadd.f32 %v619, %v620
    %v622 = vrot.slane %v621, 1
    %v623 = vadd.f32 %v621, %v622
    %v624 = vmul.f32 %v616, %v616
    %v625 = vsel %vm229, %v624, 0.0
    %v626 = vrot.slane %v625, 4
    %v627 = vadd.f32 %v625, %v626
    %v628 = vrot.slane %v627, 2
    %v629 = vadd.f32 %v627, %v628
    %v630 = vrot.slane %v629, 1
    %v631 = vadd.f32 %v629, %v630
    %v632 = vmul.f32 %v623, 0.125
    %v633 = vmul.f32 %v631, 0.125
    %v634 = vmul.f32 %v632, %v632
    %v635 = vsub.f32 %v633, %v634
    %v636 = vld [vmem:[#allocation2 + $0xe3] sm:$0x1]
    %v637 = vadd.f32 %v635, 1e-05
    %v638 = vrsqrt.pop %v637
    %v639 = vmul.f32 %v636, %v638
    %v640 = vld [vmem:[#allocation2 + $0xe4] sm:$0x1]
    %v641 = vmul.f32 %v632, %v639
    %v642 = vsub.f32 %v640, %v641
    %v643 = vlaneseq
    %v644 = vshrl.u32 %v643, 7
    %v645 = vsub.s32 0, %v644
    %v646 = vrot.slane %v639, %v645
    %v647 = vmul.f32 %v616, %v646
    %v648 = vlaneseq
    %v649 = vshrl.u32 %v648, 7
    %v650 = vsub.s32 0, %v649
    %v651 = vrot.slane %v642, %v650
    %v652 = vadd.f32 %v647, %v651
    %v653 = vmax.f32 %v652, 0.0
    %v654 = vld [vmem:[#allocation2 + $0x80] sm:$0xff]
    %v655 = vld [vmem:[#allocation2 + $0x88] sm:$0xf]
    %v657 = vsel %vm229, %v653, 0
    %v660 = vsel %vm272, %v655, 0
    %662 = vmatprep.subr.mxu0 0.0
    %663 = vmatpush1.msra.mxu0 0.0
    %664 = vmatprep.subr.mxu0 0.0
    %665 = vmatpush1.msra.mxu0 0.0
    %666 = vmatprep.subr.mxu0 0.0
    %667 = vmatpush1.msra.mxu0 0.0
    %668 = vmatprep.subr.mxu0 0.0
    %669 = vmatpush1.msra.mxu0 0.0
    %670 = vmatprep.subr.mxu0 0.0
    %671 = vmatpush1.msra.mxu0 0.0
    %672 = vmatprep.subr.mxu0 0.0
    %673 = vmatpush1.msra.mxu0 0.0
    %674 = vmatprep.subr.mxu0 0.0
    %675 = vmatpush1.msra.mxu0 0.0
    %676 = vmatprep.subr.mxu0 0.0
    %677 = vmatpush1.msra.mxu0 0.0
    %678 = vmatprep.subr.mxu0 0.0
    %679 = vmatpush1.msra.mxu0 0.0
    %680 = vmatprep.subr.mxu0 0.0
    %681 = vmatpush1.msra.mxu0 0.0
    %682 = vmatprep.subr.mxu0 0.0
    %683 = vmatpush1.msra.mxu0 0.0
    %684 = vmatprep.subr.mxu0 0.0
    %685 = vmatpush1.msra.mxu0 0.0
    %686 = vmatprep.subr.mxu0 0.0
    %687 = vmatpush1.msra.mxu0 0.0
    %688 = vmatprep.subr.mxu0 0.0
    %689 = vmatpush1.msra.mxu0 0.0
    %690 = vmatprep.subr.mxu0 0.0
    %691 = vmatpush1.msra.mxu0 %v660
    %692 = vmatprep.subr.mxu0 0.0
    %693 = vmatpush1.msra.mxu0 %v654
    %694 = vmatprep.subr.mxu0 0.0
    %695 = vmatpush2.msra.mxu0 0.0
    %696 = vmatprep.subr.mxu0 0.0
    %697 = vmatpush2.msra.mxu0 0.0
    %698 = vmatprep.subr.mxu0 0.0
    %699 = vmatpush2.msra.mxu0 0.0
    %700 = vmatprep.subr.mxu0 0.0
    %701 = vmatpush2.msra.mxu0 0.0
    %702 = vmatprep.subr.mxu0 0.0
    %703 = vmatpush2.msra.mxu0 0.0
    %704 = vmatprep.subr.mxu0 0.0
    %705 = vmatpush2.msra.mxu0 0.0
    %706 = vmatprep.subr.mxu0 0.0
    %707 = vmatpush2.msra.mxu0 0.0
    %708 = vmatprep.subr.mxu0 0.0
    %709 = vmatpush2.msra.mxu0 0.0
    %710 = vmatprep.subr.mxu0 0.0
    %711 = vmatpush2.msra.mxu0 0.0
    %712 = vmatprep.subr.mxu0 0.0
    %713 = vmatpush2.msra.mxu0 0.0
    %714 = vmatprep.subr.mxu0 0.0
    %715 = vmatpush2.msra.mxu0 0.0
    %716 = vmatprep.subr.mxu0 0.0
    %717 = vmatpush2.msra.mxu0 0.0
    %718 = vmatprep.subr.mxu0 0.0
    %719 = vmatpush2.msra.mxu0 0.0
    %720 = vmatprep.subr.mxu0 0.0
    %721 = vmatpush2.msra.mxu0 0.0
    %722 = vmatprep.subr.mxu0 0.0
    %723 = vmatpush2.msra.mxu0 0.0
    %724 = vmatprep.subr.mxu0 0.0
    %725 = vmatpush2.msra.mxu0 0.0
    %726 = vmatprep.mubr.f32.mxu0 0.0
    %727 = vmatmul.mubr.f32.gmra.mxu0 %v657
    %v728 = vpop.f32.mrf.mxu0
    %v729 = vadd.f32 0.0, %v728
    %v730 = vpop.f32.mrf.mxu0
    %731 = vdwg.mxu0
    %v732 = vsel %vm229, %v729, 0.0
    %v733 = vrot.slane %v732, 4
    %v734 = vadd.f32 %v732, %v733
    %v735 = vrot.slane %v734, 2
    %v736 = vadd.f32 %v734, %v735
    %v737 = vrot.slane %v736, 1
    %v738 = vadd.f32 %v736, %v737
    %v739 = vmul.f32 %v729, %v729
    %v740 = vsel %vm229, %v739, 0.0
    %v741 = vrot.slane %v740, 4
    %v742 = vadd.f32 %v740, %v741
    %v743 = vrot.slane %v742, 2
    %v744 = vadd.f32 %v742, %v743
    %v745 = vrot.slane %v744, 1
    %v746 = vadd.f32 %v744, %v745
    %v747 = vmul.f32 %v738, 0.125
    %v748 = vmul.f32 %v746, 0.125
    %v749 = vmul.f32 %v747, %v747
    %v750 = vsub.f32 %v748, %v749
    %v751 = vld [vmem:[#allocation2 + $0xe5] sm:$0x1]
    %v752 = vadd.f32 %v750, 1e-05
    %v753 = vrsqrt.pop %v752
    %v754 = vmul.f32 %v751, %v753
    %v755 = vld [vmem:[#allocation2 + $0xe6] sm:$0x1]
    %v756 = vmul.f32 %v747, %v754
    %v757 = vsub.f32 %v755, %v756
    %v758 = vlaneseq
    %v759 = vshrl.u32 %v758, 7
    %v760 = vsub.s32 0, %v759
    %v761 = vrot.slane %v754, %v760
    %v762 = vmul.f32 %v729, %v761
    %v763 = vlaneseq
    %v764 = vshrl.u32 %v763, 7
    %v765 = vsub.s32 0, %v764
    %v766 = vrot.slane %v757, %v765
    %v767 = vadd.f32 %v762, %v766
    %v768 = vmax.f32 %v767, 0.0
    %v769 = vld [vmem:[#allocation2 + $0x90] sm:$0xff]
    %v770 = vld [vmem:[#allocation2 + $0x98] sm:$0xf]
    %v772 = vsel %vm229, %v768, 0
    %v775 = vsel %vm272, %v770, 0
    %777 = vmatprep.subr.mxu0 0.0
    %778 = vmatpush1.msra.mxu0 0.0
    %779 = vmatprep.subr.mxu0 0.0
    %780 = vmatpush1.msra.mxu0 0.0
    %781 = vmatprep.subr.mxu0 0.0
    %782 = vmatpush1.msra.mxu0 0.0
    %783 = vmatprep.subr.mxu0 0.0
    %784 = vmatpush1.msra.mxu0 0.0
    %785 = vmatprep.subr.mxu0 0.0
    %786 = vmatpush1.msra.mxu0 0.0
    %787 = vmatprep.subr.mxu0 0.0
    %788 = vmatpush1.msra.mxu0 0.0
    %789 = vmatprep.subr.mxu0 0.0
    %790 = vmatpush1.msra.mxu0 0.0
    %791 = vmatprep.subr.mxu0 0.0
    %792 = vmatpush1.msra.mxu0 0.0
    %793 = vmatprep.subr.mxu0 0.0
    %794 = vmatpush1.msra.mxu0 0.0
    %795 = vmatprep.subr.mxu0 0.0
    %796 = vmatpush1.msra.mxu0 0.0
    %797 = vmatprep.subr.mxu0 0.0
    %798 = vmatpush1.msra.mxu0 0.0
    %799 = vmatprep.subr.mxu0 0.0
    %800 = vmatpush1.msra.mxu0 0.0
    %801 = vmatprep.subr.mxu0 0.0
    %802 = vmatpush1.msra.mxu0 0.0
    %803 = vmatprep.subr.mxu0 0.0
    %804 = vmatpush1.msra.mxu0 0.0
    %805 = vmatprep.subr.mxu0 0.0
    %806 = vmatpush1.msra.mxu0 %v775
    %807 = vmatprep.subr.mxu0 0.0
    %808 = vmatpush1.msra.mxu0 %v769
    %809 = vmatprep.subr.mxu0 0.0
    %810 = vmatpush2.msra.mxu0 0.0
    %811 = vmatprep.subr.mxu0 0.0
    %812 = vmatpush2.msra.mxu0 0.0
    %813 = vmatprep.subr.mxu0 0.0
    %814 = vmatpush2.msra.mxu0 0.0
    %815 = vmatprep.subr.mxu0 0.0
    %816 = vmatpush2.msra.mxu0 0.0
    %817 = vmatprep.subr.mxu0 0.0
    %818 = vmatpush2.msra.mxu0 0.0
    %819 = vmatprep.subr.mxu0 0.0
    %820 = vmatpush2.msra.mxu0 0.0
    %821 = vmatprep.subr.mxu0 0.0
    %822 = vmatpush2.msra.mxu0 0.0
    %823 = vmatprep.subr.mxu0 0.0
    %824 = vmatpush2.msra.mxu0 0.0
    %825 = vmatprep.subr.mxu0 0.0
    %826 = vmatpush2.msra.mxu0 0.0
    %827 = vmatprep.subr.mxu0 0.0
    %828 = vmatpush2.msra.mxu0 0.0
    %829 = vmatprep.subr.mxu0 0.0
    %830 = vmatpush2.msra.mxu0 0.0
    %831 = vmatprep.subr.mxu0 0.0
    %832 = vmatpush2.msra.mxu0 0.0
    %833 = vmatprep.subr.mxu0 0.0
    %834 = vmatpush2.msra.mxu0 0.0
    %835 = vmatprep.subr.mxu0 0.0
    %836 = vmatpush2.msra.mxu0 0.0
    %837 = vmatprep.subr.mxu0 0.0
    %838 = vmatpush2.msra.mxu0 0.0
    %839 = vmatprep.subr.mxu0 0.0
    %840 = vmatpush2.msra.mxu0 0.0
    %841 = vmatprep.mubr.f32.mxu0 0.0
    %842 = vmatmul.mubr.f32.gmra.mxu0 %v772
    %v843 = vpop.f32.mrf.mxu0
    %v844 = vadd.f32 0.0, %v843
    %v845 = vpop.f32.mrf.mxu0
    %846 = vdwg.mxu0
    %v847 = vsel %vm107, %v844, 0.0
    %v848 = vrot.slane %v847, 4
    %v849 = vadd.f32 %v847, %v848
    %v850 = vrot.slane %v849, 2
    %v851 = vadd.f32 %v849, %v850
    %v852 = vrot.slane %v851, 1
    %v853 = vadd.f32 %v851, %v852
    %v854 = vmul.f32 %v844, %v844
    %v855 = vsel %vm107, %v854, 0.0
    %v856 = vrot.slane %v855, 4
    %v857 = vadd.f32 %v855, %v856
    %v858 = vrot.slane %v857, 2
    %v859 = vadd.f32 %v857, %v858
    %v860 = vrot.slane %v859, 1
    %v861 = vadd.f32 %v859, %v860
    %v862 = vmul.f32 %v853, 0.125
    %v863 = vmul.f32 %v861, 0.125
    %v864 = vmul.f32 %v862, %v862
    %v865 = vsub.f32 %v863, %v864
    %v866 = vld [vmem:[#allocation2 + $0xe7] sm:$0x1]
    %v867 = vadd.f32 %v865, 1e-05
    %v868 = vrsqrt.pop %v867
    %v869 = vmul.f32 %v866, %v868
    %v870 = vld [vmem:[#allocation2 + $0xe8] sm:$0x1]
    %v871 = vmul.f32 %v862, %v869
    %v872 = vsub.f32 %v870, %v871
    %v873 = vlaneseq
    %v874 = vshrl.u32 %v873, 7
    %v875 = vsub.s32 0, %v874
    %v876 = vrot.slane %v869, %v875
    %v877 = vmul.f32 %v844, %v876
    %v878 = vlaneseq
    %v879 = vshrl.u32 %v878, 7
    %v880 = vsub.s32 0, %v879
    %v881 = vrot.slane %v872, %v880
    %v882 = vadd.f32 %v877, %v881
    %v883 = vmax.f32 %v882, 0.0
    %v884 = vld [vmem:[#allocation2 + $0xa0] sm:$0xff]
    %v885 = vld [vmem:[#allocation2 + $0xa8] sm:$0xff]
    %v886 = vld [vmem:[#allocation2 + $0xb0] sm:$0xff]
    %v887 = vld [vmem:[#allocation2 + $0xb8] sm:$0xff]
    %v888 = vld [vmem:[#allocation2 + $0xc0] sm:$0xff]
    %v889 = vld [vmem:[#allocation2 + $0xc8] sm:$0xff]
    %v890 = vld [vmem:[#allocation2 + $0xd0] sm:$0x3]
    %v892 = vsel %vm107, %v883, 0
    %v895 = vsel %vm155, %v890, 0
    %897 = vmatprep.subr.mxu0 0.0
    %898 = vmatpush1.msra.mxu0 0.0
    %899 = vmatprep.subr.mxu0 0.0
    %900 = vmatpush1.msra.mxu0 0.0
    %901 = vmatprep.subr.mxu0 0.0
    %902 = vmatpush1.msra.mxu0 0.0
    %903 = vmatprep.subr.mxu0 0.0
    %904 = vmatpush1.msra.mxu0 0.0
    %905 = vmatprep.subr.mxu0 0.0
    %906 = vmatpush1.msra.mxu0 0.0
    %907 = vmatprep.subr.mxu0 0.0
    %908 = vmatpush1.msra.mxu0 0.0
    %909 = vmatprep.subr.mxu0 0.0
    %910 = vmatpush1.msra.mxu0 0.0
    %911 = vmatprep.subr.mxu0 0.0
    %912 = vmatpush1.msra.mxu0 0.0
    %913 = vmatprep.subr.mxu0 0.0
    %914 = vmatpush1.msra.mxu0 0.0
    %915 = vmatprep.subr.mxu0 0.0
    %916 = vmatpush1.msra.mxu0 %v895
    %917 = vmatprep.subr.mxu0 0.0
    %918 = vmatpush1.msra.mxu0 %v889
    %919 = vmatprep.subr.mxu0 0.0
    %920 = vmatpush1.msra.mxu0 %v888
    %921 = vmatprep.subr.mxu0 0.0
    %922 = vmatpush1.msra.mxu0 %v887
    %923 = vmatprep.subr.mxu0 0.0
    %924 = vmatpush1.msra.mxu0 %v886
    %925 = vmatprep.subr.mxu0 0.0
    %926 = vmatpush1.msra.mxu0 %v885
    %927 = vmatprep.subr.mxu0 0.0
    %928 = vmatpush1.msra.mxu0 %v884
    %929 = vmatprep.subr.mxu0 0.0
    %930 = vmatpush2.msra.mxu0 0.0
    %931 = vmatprep.subr.mxu0 0.0
    %932 = vmatpush2.msra.mxu0 0.0
    %933 = vmatprep.subr.mxu0 0.0
    %934 = vmatpush2.msra.mxu0 0.0
    %935 = vmatprep.subr.mxu0 0.0
    %936 = vmatpush2.msra.mxu0 0.0
    %937 = vmatprep.subr.mxu0 0.0
    %938 = vmatpush2.msra.mxu0 0.0
    %939 = vmatprep.subr.mxu0 0.0
    %940 = vmatpush2.msra.mxu0 0.0
    %941 = vmatprep.subr.mxu0 0.0
    %942 = vmatpush2.msra.mxu0 0.0
    %943 = vmatprep.subr.mxu0 0.0
    %944 = vmatpush2.msra.mxu0 0.0
    %945 = vmatprep.subr.mxu0 0.0
    %946 = vmatpush2.msra.mxu0 0.0
    %947 = vmatprep.subr.mxu0 0.0
    %948 = vmatpush2.msra.mxu0 0.0
    %949 = vmatprep.subr.mxu0 0.0
    %950 = vmatpush2.msra.mxu0 0.0
    %951 = vmatprep.subr.mxu0 0.0
    %952 = vmatpush2.msra.mxu0 0.0
    %953 = vmatprep.subr.mxu0 0.0
    %954 = vmatpush2.msra.mxu0 0.0
    %955 = vmatprep.subr.mxu0 0.0
    %956 = vmatpush2.msra.mxu0 0.0
    %957 = vmatprep.subr.mxu0 0.0
    %958 = vmatpush2.msra.mxu0 0.0
    %959 = vmatprep.subr.mxu0 0.0
    %960 = vmatpush2.msra.mxu0 0.0
    %961 = vmatprep.mubr.f32.mxu0 0.0
    %962 = vmatmul.mubr.f32.gmra.mxu0 %v892
    %v963 = vpop.f32.mrf.mxu0
    %v964 = vadd.f32 0.0, %v963
    %v965 = vpop.f32.mrf.mxu0
    %966 = vdwg.mxu0
    %v967 = vsel %vm33, %v964, 0.0
    %v968 = vrot.slane %v967, 4
    %v969 = vadd.f32 %v967, %v968
    %v970 = vrot.slane %v969, 2
    %v971 = vadd.f32 %v969, %v970
    %v972 = vrot.slane %v971, 1
    %v973 = vadd.f32 %v971, %v972
    %v974 = vmul.f32 %v964, %v964
    %v975 = vsel %vm33, %v974, 0.0
    %v976 = vrot.slane %v975, 4
    %v977 = vadd.f32 %v975, %v976
    %v978 = vrot.slane %v977, 2
    %v979 = vadd.f32 %v977, %v978
    %v980 = vrot.slane %v979, 1
    %v981 = vadd.f32 %v979, %v980
    %v982 = vmul.f32 %v973, 0.125
    %v983 = vmul.f32 %v981, 0.125
    %v984 = vmul.f32 %v982, %v982
    %v985 = vsub.f32 %v983, %v984
    %v986 = vld [vmem:[#allocation2 + $0xe9] sm:$0x1]
    %v987 = vadd.f32 %v985, 1e-05
    %v988 = vrsqrt.pop %v987
    %v989 = vmul.f32 %v986, %v988
    %v990 = vld [vmem:[#allocation2 + $0xea] sm:$0x1]
    %v991 = vmul.f32 %v982, %v989
    %v992 = vsub.f32 %v990, %v991
    %v993 = vlaneseq
    %v994 = vshrl.u32 %v993, 7
    %v995 = vsub.s32 0, %v994
    %v996 = vrot.slane %v989, %v995
    %v997 = vmul.f32 %v964, %v996
    %v998 = vlaneseq
    %v999 = vshrl.u32 %v998, 7
    %v1000 = vsub.s32 0, %v999
    %v1001 = vrot.slane %v992, %v1000
    %v1002 = vadd.f32 %v997, %v1001
    %1004 = vrot.lane.b32.xlu0 %v526, 16
    %v1005 = vpop.permute.xlu0 %1004
    %v1007 = vsel %vm33, %v1002, %v1005
    %vm1008 = vcmask 146432
    %v1009 = vsel %vm1008, %v1007, %v1005
    %vm1010 = vcmask 162816
    %v1011 = vsel %vm1010, %v1009, 0.0
    %1012 = vst [vmem:[#allocation5] sm:$0xff] %v1011
    // Predicated region
    $region18: #{tpu_custom_call.1} parent=1 // pred_check
      _
    $region19: #{tpu_custom_call.1} parent=1 // pred_check_branch
      %1014 = sbr.rel (0) target = $region21
    $region20: #{tpu_custom_call.1} parent=1 // pred_region
      %s1016 = ssub.s32 128, 128
      %1017 = vsyncadd [#allocation4], %s1016
      %s1019 = sshll.u32 [#allocation5], 4
      %s1020 = int_to_ptr.vmem [resolvable:$true] %s1019
      %1022 = dma.vmem_to_hbm [thread:$0]  %s1020, 128, %s3, [#allocation4]
    $region21: #{tpu_custom_call.1} parent=1 // pred_fallthru
      _
    // Predicated region
    $region22: #{tpu_custom_call.1} parent=1 // pred_check
      _
    $region23: #{tpu_custom_call.1} parent=1 // pred_check_branch
      %1024 = sbr.rel (0) target = $region25
    $region24: #{tpu_custom_call.1} parent=1 // pred_region
      %1025 = dma.done [#allocation4], 128
    $region25: #{tpu_custom_call.1} parent=1 // pred_fallthru
      _
    %1026 = vsyncpa [#allocation3], 1
    %1027 = vsyncpa [#allocation4], 1

</llo_original>
